<compile_context>
chip_gen: v6e
topology: v6e:2x2x1
jax: 0.10.0
libtpu: 0.0.40
codegen_flags: <defaults>
</compile_context>

<pallas_src>
import jax
import jax.numpy as jnp
from jax import lax
from jax.experimental import pallas as pl
from jax.experimental.pallas import tpu as pltpu

_OUT_ROWS = 8  # padded output rows (occ_cout + unc_cout <= 8)


# ----------------------------------------------------------------------------
# Fused kernel: both heads, all three BasicBlocks, SB lane-packed samples/step.
# ----------------------------------------------------------------------------
def _make_fused_head_kernel(H, W, F, SB, eps=1e-5):
    HW = H * W
    L = SB * HW
    C2 = 2 * F

    # Tap offsets in flattened-lane space, (dy, dx) raster order.
    tap_deltas = [dy * W + dx for dy in (-1, 0, 1) for dx in (-1, 0, 1)]

    def kernel(x_ref, mask_ref, w1_ref, w2_ref, w3_ref, par_ref, out_ref):
        x = x_ref[0]            # (F, L) channel-major, SB samples lane-packed
        par = par_ref[...]      # (2F, 8) channel-major parameter columns
        mvals = mask_ref[...]   # (8, L)  f32 boundary masks (non-center taps)

        # Hoisted, pre-broadcast validity masks (mask == in-kernel zero pad).
        def make_masks(rows):
            ms, k = [], 0
            for d in tap_deltas:
                if d == 0:
                    ms.append(None)                       # center tap: always valid
                else:
                    ms.append(jnp.broadcast_to(mvals[k:k + 1], (rows, L)))
                    k += 1
            return ms

        masks_f = make_masks(F)     # layer-1 patches (F channels)
        masks_c2 = make_masks(C2)   # layer-2/3 patches (2F channels)

        def conv3x3(y, w2d, masks):
            # y: (C, L); w2d: (rows, 9*C) packed in (tap, channel) column order.
            pieces = []
            for d, m in zip(tap_deltas, masks):
                if d == 0:
                    pieces.append(y)
                else:
                    # out[p] = y[p + d] when the source pixel is in-bounds
                    # (same sample, inside the image), else 0 (the zero pad).
                    pieces.append(pltpu.roll(y, shift=(-d) % L, axis=1) * m)
            patches = jnp.concatenate(pieces, axis=0)     # (9*C, L)
            return lax.dot_general(w2d, patches, (((1,), (0,)), ((), ())),
                                   preferred_element_type=jnp.float32)

        def gn_relu(y, gamma, beta):
            # GroupNorm(num_groups=1): stats per head block (F rows) and per
            # sample (HW lane block); affine + ReLU on the full (2F, L) slab.
            blocks = []
            for h in range(2):
                yh = y[h * F:(h + 1) * F]
                cols = []
                for s in range(SB):
                    ys = yh[:, s * HW:(s + 1) * HW]
                    mean = jnp.mean(ys)
                    d = ys - mean                         # reused for var + norm
                    var = jnp.mean(d * d)
                    cols.append(d * lax.rsqrt(var + eps))
                blocks.append(cols[0] if SB == 1 else jnp.concatenate(cols, axis=1))
            yn = jnp.concatenate(blocks, axis=0)
            return jnp.maximum(yn * gamma + beta, 0.0)

        # Layer 1: both heads read the same x -> one stacked matmul.
        y = conv3x3(x, w1_ref[...], masks_f) + par[:, 0:1]
        y = gn_relu(y, par[:, 1:2], par[:, 2:3])
        # Layer 2: block-diagonal weights across heads.
        y = conv3x3(y, w2_ref[...], masks_c2) + par[:, 3:4]
        y = gn_relu(y, par[:, 4:5], par[:, 5:6])
        # Layer 3: no GN / ReLU; occ -> rows 0..1, unc -> row 2, rest zero.
        y = conv3x3(y, w3_ref[...], masks_c2) + par[:_OUT_ROWS, 6:7]
        out_ref[0] = y.astype(out_ref.dtype)

    return kernel


# ----------------------------------------------------------------------------
# Parameter packing (PyTorch layout -> fused kernel layout).
# ----------------------------------------------------------------------------
def _pack_conv_w(w, cin_pad, groups, group, rows_out):
    """w: (Cout, Cin, 3, 3) PyTorch layout -> (rows_out, 9*groups*cin_pad).

    Column order is (tap, group, ci), matching the in-kernel patch stack; the
    filter reads only channel-group `group` of the concatenated activation.
    """
    co, ci, kh, kw = w.shape
    w_t = jnp.transpose(w, (0, 2, 3, 1)).reshape(co, kh * kw, ci)   # (co, 9, ci)
    full = jnp.zeros((rows_out, kh * kw, groups, cin_pad), jnp.float32)
    full = full.at[:co, :, group, :ci].set(w_t)
    return full.reshape(rows_out, kh * kw * groups * cin_pad)


def pack_fused_params(occ_layers, unc_layers, F):
    occ_cout = occ_layers[2]["w"].shape[0]
    unc_cout = unc_layers[2]["w"].shape[0]
    assert occ_cout + unc_cout <= _OUT_ROWS

    # Layer 1: shared input (padded to F channels); heads stacked on rows.
    w1 = jnp.concatenate([_pack_conv_w(occ_layers[0]["w"], F, 1, 0, F),
                          _pack_conv_w(unc_layers[0]["w"], F, 1, 0, F)], axis=0)
    # Layer 2: block-diagonal across heads (occ reads group 0, unc group 1).
    w2 = jnp.concatenate([_pack_conv_w(occ_layers[1]["w"], F, 2, 0, F),
                          _pack_conv_w(unc_layers[1]["w"], F, 2, 1, F)], axis=0)
    # Layer 3: occ filters -> rows [0, occ_cout), unc -> next rows, rest zero.
    w3 = jnp.concatenate(
        [_pack_conv_w(occ_layers[2]["w"], F, 2, 0, occ_cout),
         _pack_conv_w(unc_layers[2]["w"], F, 2, 1, unc_cout),
         jnp.zeros((_OUT_ROWS - occ_cout - unc_cout, 9 * 2 * F), jnp.float32)],
        axis=0)

    # bias / GN gamma / GN beta packed channel-major into one (2F, 8) block:
    # columns = [b1, g1, be1, b2, g2, be2, b3, unused], rows 0..F-1 occ, F..2F-1 unc.
    par = jnp.zeros((2 * F, 8), jnp.float32)
    for i in range(2):
        par = par.at[:F, 3 * i + 0].set(occ_layers[i]["b"])
        par = par.at[F:, 3 * i + 0].set(unc_layers[i]["b"])
        par = par.at[:F, 3 * i + 1].set(occ_layers[i]["gamma"])
        par = par.at[F:, 3 * i + 1].set(unc_layers[i]["gamma"])
        par = par.at[:F, 3 * i + 2].set(occ_layers[i]["beta"])
        par = par.at[F:, 3 * i + 2].set(unc_layers[i]["beta"])
    par = par.at[:occ_cout, 6].set(occ_layers[2]["b"])
    par = par.at[occ_cout:occ_cout + unc_cout, 6].set(unc_layers[2]["b"])
    return w1, w2, w3, par, occ_cout, unc_cout


def make_head_params(key, in_channels, n_features, out_channels):
    """Three BasicBlocks: (Cin->F, GN+ReLU), (F->F, GN+ReLU), (F->Cout, plain)."""
    specs = [
        (in_channels, n_features, True, True),
        (n_features, n_features, True, True),
        (n_features, out_channels, False, False),
    ]
    layers = []
    for ci, co, use_gn, relu in specs:
        key, kw, kb = jax.random.split(key, 3)
        scale = (2.0 / (9 * ci)) ** 0.5
        w = jax.random.normal(kw, (co, ci, 3, 3), jnp.float32) * scale
        b = jax.random.normal(kb, (co,), jnp.float32) * 0.01
        layers.append(dict(w=w, b=b,
                           gamma=jnp.ones((co,), jnp.float32),
                           beta=jnp.zeros((co,), jnp.float32),
                           use_gn=use_gn, relu=relu))
    return layers, key


# ----------------------------------------------------------------------------
# Wrapper helpers.
# ----------------------------------------------------------------------------
def _num_tensorcores_per_chip():
    # v7x (and v4/v5p megacore) expose two TensorCores per chip to Pallas'
    # "parallel" grid sharding; v5e/v6e have one.  Fall back to 1 on failure.
    try:
        kind = jax.devices()[0].device_kind.lower()
    except Exception:
        return 1
    return 2 if any(k in kind for k in ("v7", "v5p", "v4")) else 1


def _make_tap_masks(H, W, SB):
    """(8, SB*H*W) f32 validity mask per non-center tap (raster (dy,dx) order).

    A zero marks an out-of-image source pixel (== the conv's zero padding);
    it also zeroes every roll wraparound across sample / array boundaries.
    """
    HW = H * W
    pos = jnp.arange(SB * HW, dtype=jnp.int32) % HW
    hh, ww = pos // W, pos % W
    rows = []
    for dy in (-1, 0, 1):
        for dx in (-1, 0, 1):
            if dy == 0 and dx == 0:
                continue
            valid = ((hh + dy >= 0) & (hh + dy < H) &
                     (ww + dx >= 0) & (ww + dx < W))
            rows.append(valid.astype(jnp.float32))
    return jnp.stack(rows, axis=0)


# ----------------------------------------------------------------------------
# Forward pass (matches BaselineHead.forward).
# ----------------------------------------------------------------------------
def baseline_head_forward(x_nchw, occ_layers, unc_layers, n_features,
                          inference_mode=False, samples_per_block=None):
    N, Cin, H, W = x_nchw.shape
    F = n_features
    HW = H * W
    # GroupNorm stats run over all F rows of a head block, so n_features must
    # itself be tile-aligned (only the *input* channels are zero-padded).
    assert F % 8 == 0 and Cin <= F

    if samples_per_block is None:
        tc = _num_tensorcores_per_chip()
        grid_steps = tc if N % tc == 0 else 1
        samples_per_block = N // grid_steps
    SB = samples_per_block
    assert N % SB == 0
    G = N // SB
    L = SB * HW

    w1, w2, w3, par, occ_cout, unc_cout = pack_fused_params(occ_layers, unc_layers, F)
    masks = _make_tap_masks(H, W, SB)

    # Channel-major, lane-packed batch: (G, F, SB*HW).
    x_flat = x_nchw.reshape(N, Cin, HW)
    if Cin < F:
        x_flat = jnp.pad(x_flat, ((0, 0), (0, F - Cin), (0, 0)))
    x_packed = (x_flat.reshape(G, SB, F, HW)
                .transpose(0, 2, 1, 3)
                .reshape(G, F, L))

    out = pl.pallas_call(
        _make_fused_head_kernel(H, W, F, SB),
        out_shape=jax.ShapeDtypeStruct((G, _OUT_ROWS, L), jnp.float32),
        grid_spec=pltpu.PrefetchScalarGridSpec(
            num_scalar_prefetch=0,
            grid=(G,),
            in_specs=[
                pl.BlockSpec((1, F, L), lambda g: (g, 0, 0)),         # x slab
                pl.BlockSpec((8, L), lambda g: (0, 0)),               # tap masks
                pl.BlockSpec((2 * F, 9 * F), lambda g: (0, 0)),       # layer-1 W
                pl.BlockSpec((2 * F, 18 * F), lambda g: (0, 0)),      # layer-2 W
                pl.BlockSpec((_OUT_ROWS, 18 * F), lambda g: (0, 0)),  # layer-3 W
                pl.BlockSpec((2 * F, 8), lambda g: (0, 0)),           # bias/GN
            ],
            out_specs=pl.BlockSpec((1, _OUT_ROWS, L), lambda g: (g, 0, 0)),
        ),
        compiler_params=pltpu.CompilerParams(
            dimension_semantics=("parallel",)),
    )(x_packed, masks, w1, w2, w3, par)

    # (G, 8, SB*HW) -> (N, 8, H, W) -> split the two heads.
    out = (out.reshape(G, _OUT_ROWS, SB, HW)
           .transpose(0, 2, 1, 3)
           .reshape(N, _OUT_ROWS, H, W))
    occ = out[:, :occ_cout]
    unc = out[:, occ_cout:occ_cout + unc_cout]

    outputs = {"occlusion": occ, "uncertainty": unc}
    if inference_mode:
        outputs["occlusion"] = jax.nn.softmax(occ, axis=1)[0, 1:, :, :]
        outputs["uncertainty"] = jnp.sqrt(jnp.exp(unc[0, :, :, :]))
    return outputs


# ----------------------------------------------------------------------------
# Pure-JAX reference (for numerical verification).
# ----------------------------------------------------------------------------
def _ref_block(x, p):
    y = lax.conv_general_dilated(
        x, p["w"], window_strides=(1, 1), padding=((1, 1), (1, 1)),
        dimension_numbers=("NCHW", "OIHW", "NCHW"),
        precision=lax.Precision.HIGHEST)
    y = y + p["b"][None, :, None, None]
    if p["use_gn"]:
        mean = jnp.mean(y, axis=(1, 2, 3), keepdims=True)
        var = jnp.mean(jnp.square(y - mean), axis=(1, 2, 3), keepdims=True)
        y = (y - mean) * lax.rsqrt(var + 1e-5)
        y = y * p["gamma"][None, :, None, None] + p["beta"][None, :, None, None]
    if p["relu"]:
        y = jnp.maximum(y, 0.0)
    return y


def _ref_head(layers, x):
    for p in layers:
        x = _ref_block(x, p)
    return x


if __name__ == "__main__":
    # Small shapes consistent with the module: batch=2, in_channels=4, 16x16.
    N, IN_CHANNELS, H, W = 2, 4, 16, 16
    N_FEATURES = 8

    key = jax.random.PRNGKey(0)
    key, kx = jax.random.split(key)
    x = jax.random.normal(kx, (N, IN_CHANNELS, H, W), jnp.float32)

    occ_layers, key = make_head_params(key, IN_CHANNELS, N_FEATURES, out_channels=2)
    unc_layers, key = make_head_params(key, IN_CHANNELS, N_FEATURES, out_channels=1)

    # Training-mode forward (raw logits / log-variance maps).
    out = baseline_head_forward(x, occ_layers, unc_layers, N_FEATURES,
                                inference_mode=False)
    jax.block_until_ready(out["occlusion"])
    jax.block_until_ready(out["uncertainty"])
    assert out["occlusion"].shape == (N, 2, H, W)
    assert out["uncertainty"].shape == (N, 1, H, W)

    # Numerical check against a pure-JAX reference of the same math.
    ref_occ = _ref_head(occ_layers, x)
    ref_unc = _ref_head(unc_layers, x)
    occ_err = float(jnp.max(jnp.abs(out["occlusion"] - ref_occ)))
    unc_err = float(jnp.max(jnp.abs(out["uncertainty"] - ref_unc)))
    assert occ_err < 2e-3, f"occlusion mismatch vs reference: max abs err {occ_err}"
    assert unc_err < 2e-3, f"uncertainty mismatch vs reference: max abs err {unc_err}"

    # Also exercise the single-step lane-packed path explicitly (v5e/v6e mode)
    # and the one-sample-per-step path (v7x mode), whatever chip we are on.
    out_pack = baseline_head_forward(x, occ_layers, unc_layers, N_FEATURES,
                                     samples_per_block=N)
    out_step = baseline_head_forward(x, occ_layers, unc_layers, N_FEATURES,
                                     samples_per_block=1)
    assert float(jnp.max(jnp.abs(out_pack["occlusion"] - ref_occ))) < 2e-3
    assert float(jnp.max(jnp.abs(out_step["occlusion"] - ref_occ))) < 2e-3

    # Inference-mode forward (softmax occlusion prob, sigma from log-variance).
    out_inf = baseline_head_forward(x, occ_layers, unc_layers, N_FEATURES,
                                    inference_mode=True)
    jax.block_until_ready(out_inf["occlusion"])
    jax.block_until_ready(out_inf["uncertainty"])
    assert out_inf["occlusion"].shape == (1, H, W)
    assert out_inf["uncertainty"].shape == (1, H, W)

    print("KERNEL_OK")
</pallas_src>

<mosaic_0001>
module attributes {stable_mosaic.version = 11 : i64} {
  func.func @kernel(%arg0: i32, %arg1: memref<1x8x512xf32, #tpu.memory_space<vmem>>, %arg2: memref<8x512xf32, #tpu.memory_space<vmem>>, %arg3: memref<16x72xf32, #tpu.memory_space<vmem>>, %arg4: memref<16x144xf32, #tpu.memory_space<vmem>>, %arg5: memref<8x144xf32, #tpu.memory_space<vmem>>, %arg6: memref<16x8xf32, #tpu.memory_space<vmem>>, %arg7: memref<1x8x512xf32, #tpu.memory_space<vmem>>) attributes {dimension_semantics = [#tpu.dimension_semantics<parallel>], iteration_bounds = array<i64: 1>, scalar_prefetch = 0 : i64, scratch_operands = 0 : i64, tpu.core_type = #tpu.core_type<tc>, window_params = [{transform_indices = @transform_0, window_bounds = array<i64: 1, 8, 512>}, {pipeline_mode = #tpu.pipeline_mode<synchronous>, transform_indices = @transform_1, window_bounds = array<i64: 8, 512>}, {pipeline_mode = #tpu.pipeline_mode<synchronous>, transform_indices = @transform_2, window_bounds = array<i64: 16, 72>}, {pipeline_mode = #tpu.pipeline_mode<synchronous>, transform_indices = @transform_3, window_bounds = array<i64: 16, 144>}, {pipeline_mode = #tpu.pipeline_mode<synchronous>, transform_indices = @transform_4, window_bounds = array<i64: 8, 144>}, {pipeline_mode = #tpu.pipeline_mode<synchronous>, transform_indices = @transform_5, window_bounds = array<i64: 16, 8>}, {transform_indices = @transform_6, window_bounds = array<i64: 1, 8, 512>}]} {
    %c0 = arith.constant 0 : index
    %c0_0 = arith.constant 0 : index
    %c0_1 = arith.constant 0 : index
    %0 = vector.load %arg1[%c0, %c0_0, %c0_1] : memref<1x8x512xf32, #tpu.memory_space<vmem>>, vector<1x8x512xf32>
    %1 = vector.shape_cast %0 : vector<1x8x512xf32> to vector<8x512xf32>
    %c0_2 = arith.constant 0 : index
    %c0_3 = arith.constant 0 : index
    %2 = vector.load %arg6[%c0_2, %c0_3] : memref<16x8xf32, #tpu.memory_space<vmem>>, vector<16x8xf32>
    %c0_4 = arith.constant 0 : index
    %c0_5 = arith.constant 0 : index
    %3 = vector.load %arg2[%c0_4, %c0_5] : memref<8x512xf32, #tpu.memory_space<vmem>>, vector<8x512xf32>
    %4 = vector.extract_strided_slice %3 {offsets = [0, 0], sizes = [1, 512], strides = [1, 1]} : vector<8x512xf32> to vector<1x512xf32>
    %5 = vector.shape_cast %4 : vector<1x512xf32> to vector<1x512xf32>
    %6 = vector.broadcast %5 : vector<1x512xf32> to vector<8x512xf32>
    %7 = vector.extract_strided_slice %3 {offsets = [1, 0], sizes = [1, 512], strides = [1, 1]} : vector<8x512xf32> to vector<1x512xf32>
    %8 = vector.shape_cast %7 : vector<1x512xf32> to vector<1x512xf32>
    %9 = vector.broadcast %8 : vector<1x512xf32> to vector<8x512xf32>
    %10 = vector.extract_strided_slice %3 {offsets = [2, 0], sizes = [1, 512], strides = [1, 1]} : vector<8x512xf32> to vector<1x512xf32>
    %11 = vector.shape_cast %10 : vector<1x512xf32> to vector<1x512xf32>
    %12 = vector.broadcast %11 : vector<1x512xf32> to vector<8x512xf32>
    %13 = vector.extract_strided_slice %3 {offsets = [3, 0], sizes = [1, 512], strides = [1, 1]} : vector<8x512xf32> to vector<1x512xf32>
    %14 = vector.shape_cast %13 : vector<1x512xf32> to vector<1x512xf32>
    %15 = vector.broadcast %14 : vector<1x512xf32> to vector<8x512xf32>
    %16 = vector.extract_strided_slice %3 {offsets = [4, 0], sizes = [1, 512], strides = [1, 1]} : vector<8x512xf32> to vector<1x512xf32>
    %17 = vector.shape_cast %16 : vector<1x512xf32> to vector<1x512xf32>
    %18 = vector.broadcast %17 : vector<1x512xf32> to vector<8x512xf32>
    %19 = vector.extract_strided_slice %3 {offsets = [5, 0], sizes = [1, 512], strides = [1, 1]} : vector<8x512xf32> to vector<1x512xf32>
    %20 = vector.shape_cast %19 : vector<1x512xf32> to vector<1x512xf32>
    %21 = vector.broadcast %20 : vector<1x512xf32> to vector<8x512xf32>
    %22 = vector.extract_strided_slice %3 {offsets = [6, 0], sizes = [1, 512], strides = [1, 1]} : vector<8x512xf32> to vector<1x512xf32>
    %23 = vector.shape_cast %22 : vector<1x512xf32> to vector<1x512xf32>
    %24 = vector.broadcast %23 : vector<1x512xf32> to vector<8x512xf32>
    %25 = vector.extract_strided_slice %3 {offsets = [7, 0], sizes = [1, 512], strides = [1, 1]} : vector<8x512xf32> to vector<1x512xf32>
    %26 = vector.shape_cast %25 : vector<1x512xf32> to vector<1x512xf32>
    %27 = vector.broadcast %26 : vector<1x512xf32> to vector<8x512xf32>
    %28 = vector.extract_strided_slice %3 {offsets = [0, 0], sizes = [1, 512], strides = [1, 1]} : vector<8x512xf32> to vector<1x512xf32>
    %29 = vector.shape_cast %28 : vector<1x512xf32> to vector<1x512xf32>
    %30 = vector.broadcast %29 : vector<1x512xf32> to vector<16x512xf32>
    %31 = vector.extract_strided_slice %3 {offsets = [1, 0], sizes = [1, 512], strides = [1, 1]} : vector<8x512xf32> to vector<1x512xf32>
    %32 = vector.shape_cast %31 : vector<1x512xf32> to vector<1x512xf32>
    %33 = vector.broadcast %32 : vector<1x512xf32> to vector<16x512xf32>
    %34 = vector.extract_strided_slice %3 {offsets = [2, 0], sizes = [1, 512], strides = [1, 1]} : vector<8x512xf32> to vector<1x512xf32>
    %35 = vector.shape_cast %34 : vector<1x512xf32> to vector<1x512xf32>
    %36 = vector.broadcast %35 : vector<1x512xf32> to vector<16x512xf32>
    %37 = vector.extract_strided_slice %3 {offsets = [3, 0], sizes = [1, 512], strides = [1, 1]} : vector<8x512xf32> to vector<1x512xf32>
    %38 = vector.shape_cast %37 : vector<1x512xf32> to vector<1x512xf32>
    %39 = vector.broadcast %38 : vector<1x512xf32> to vector<16x512xf32>
    %40 = vector.extract_strided_slice %3 {offsets = [4, 0], sizes = [1, 512], strides = [1, 1]} : vector<8x512xf32> to vector<1x512xf32>
    %41 = vector.shape_cast %40 : vector<1x512xf32> to vector<1x512xf32>
    %42 = vector.broadcast %41 : vector<1x512xf32> to vector<16x512xf32>
    %43 = vector.extract_strided_slice %3 {offsets = [5, 0], sizes = [1, 512], strides = [1, 1]} : vector<8x512xf32> to vector<1x512xf32>
    %44 = vector.shape_cast %43 : vector<1x512xf32> to vector<1x512xf32>
    %45 = vector.broadcast %44 : vector<1x512xf32> to vector<16x512xf32>
    %46 = vector.extract_strided_slice %3 {offsets = [6, 0], sizes = [1, 512], strides = [1, 1]} : vector<8x512xf32> to vector<1x512xf32>
    %47 = vector.shape_cast %46 : vector<1x512xf32> to vector<1x512xf32>
    %48 = vector.broadcast %47 : vector<1x512xf32> to vector<16x512xf32>
    %49 = vector.extract_strided_slice %3 {offsets = [7, 0], sizes = [1, 512], strides = [1, 1]} : vector<8x512xf32> to vector<1x512xf32>
    %50 = vector.shape_cast %49 : vector<1x512xf32> to vector<1x512xf32>
    %51 = vector.broadcast %50 : vector<1x512xf32> to vector<16x512xf32>
    %c0_6 = arith.constant 0 : index
    %c0_7 = arith.constant 0 : index
    %52 = vector.load %arg3[%c0_6, %c0_7] : memref<16x72xf32, #tpu.memory_space<vmem>>, vector<16x72xf32>
    %c17_i32 = arith.constant 17 : i32
    %53 = tpu.dynamic_rotate %1 by %c17_i32 dim 1 : vector<8x512xf32>, i32 -> vector<8x512xf32>
    %54 = arith.mulf %53, %6 : vector<8x512xf32>
    %c16_i32 = arith.constant 16 : i32
    %55 = tpu.dynamic_rotate %1 by %c16_i32 dim 1 : vector<8x512xf32>, i32 -> vector<8x512xf32>
    %56 = arith.mulf %55, %9 : vector<8x512xf32>
    %c15_i32 = arith.constant 15 : i32
    %57 = tpu.dynamic_rotate %1 by %c15_i32 dim 1 : vector<8x512xf32>, i32 -> vector<8x512xf32>
    %58 = arith.mulf %57, %12 : vector<8x512xf32>
    %c1_i32 = arith.constant 1 : i32
    %59 = tpu.dynamic_rotate %1 by %c1_i32 dim 1 : vector<8x512xf32>, i32 -> vector<8x512xf32>
    %60 = arith.mulf %59, %15 : vector<8x512xf32>
    %c511_i32 = arith.constant 511 : i32
    %61 = tpu.dynamic_rotate %1 by %c511_i32 dim 1 : vector<8x512xf32>, i32 -> vector<8x512xf32>
    %62 = arith.mulf %61, %18 : vector<8x512xf32>
    %c497_i32 = arith.constant 497 : i32
    %63 = tpu.dynamic_rotate %1 by %c497_i32 dim 1 : vector<8x512xf32>, i32 -> vector<8x512xf32>
    %64 = arith.mulf %63, %21 : vector<8x512xf32>
    %c496_i32 = arith.constant 496 : i32
    %65 = tpu.dynamic_rotate %1 by %c496_i32 dim 1 : vector<8x512xf32>, i32 -> vector<8x512xf32>
    %66 = arith.mulf %65, %24 : vector<8x512xf32>
    %c495_i32 = arith.constant 495 : i32
    %67 = tpu.dynamic_rotate %1 by %c495_i32 dim 1 : vector<8x512xf32>, i32 -> vector<8x512xf32>
    %68 = arith.mulf %67, %27 : vector<8x512xf32>
    %69 = tpu.concatenate %54, %56, %58, %60, %1, %62, %64, %66, %68 in 0 : vector<8x512xf32>, vector<8x512xf32>, vector<8x512xf32>, vector<8x512xf32>, vector<8x512xf32>, vector<8x512xf32>, vector<8x512xf32>, vector<8x512xf32>, vector<8x512xf32> -> vector<72x512xf32>
    %cst = arith.constant dense<0.000000e+00> : vector<16x512xf32>
    %70 = tpu.matmul %52, %69, %cst {dimension_numbers = #tpu.dot_dimension_numbers<[1], [0], [0], [1], [0, 0, 1, 1], [], []>} : vector<16x72xf32>, vector<72x512xf32>, vector<16x512xf32> -> vector<16x512xf32>
    %71 = vector.extract_strided_slice %2 {offsets = [0, 0], sizes = [16, 1], strides = [1, 1]} : vector<16x8xf32> to vector<16x1xf32>
    %72 = vector.broadcast %71 : vector<16x1xf32> to vector<16x512xf32>
    %73 = arith.addf %70, %72 : vector<16x512xf32>
    %74 = vector.extract_strided_slice %2 {offsets = [0, 1], sizes = [16, 1], strides = [1, 1]} : vector<16x8xf32> to vector<16x1xf32>
    %75 = vector.extract_strided_slice %2 {offsets = [0, 2], sizes = [16, 1], strides = [1, 1]} : vector<16x8xf32> to vector<16x1xf32>
    %76 = vector.extract_strided_slice %73 {offsets = [0, 0], sizes = [8, 512], strides = [1, 1]} : vector<16x512xf32> to vector<8x512xf32>
    %77 = vector.extract_strided_slice %76 {offsets = [0, 0], sizes = [8, 256], strides = [1, 1]} : vector<8x512xf32> to vector<8x256xf32>
    %78 = vector.shape_cast %77 : vector<8x256xf32> to vector<1x8x256xf32>
    %cst_8 = arith.constant dense<0.000000e+00> : vector<1xf32>
    %79 = vector.multi_reduction <add>, %78, %cst_8 [1, 2] : vector<1x8x256xf32> to vector<1xf32>
    %80 = vector.shape_cast %79 : vector<1xf32> to vector<1x1x1xf32>
    %81 = vector.extract %80[0, 0, 0] : f32 from vector<1x1x1xf32>
    %cst_9 = arith.constant 2.048000e+03 : f32
    %82 = arith.divf %81, %cst_9 : f32
    %83 = vector.broadcast %82 : f32 to vector<8x256xf32>
    %84 = arith.subf %77, %83 : vector<8x256xf32>
    %85 = arith.mulf %84, %84 : vector<8x256xf32>
    %86 = vector.shape_cast %85 : vector<8x256xf32> to vector<1x8x256xf32>
    %cst_10 = arith.constant dense<0.000000e+00> : vector<1xf32>
    %87 = vector.multi_reduction <add>, %86, %cst_10 [1, 2] : vector<1x8x256xf32> to vector<1xf32>
    %88 = vector.shape_cast %87 : vector<1xf32> to vector<1x1x1xf32>
    %89 = vector.extract %88[0, 0, 0] : f32 from vector<1x1x1xf32>
    %cst_11 = arith.constant 2.048000e+03 : f32
    %90 = arith.divf %89, %cst_11 : f32
    %cst_12 = arith.constant 9.99999974E-6 : f32
    %91 = arith.addf %90, %cst_12 : f32
    %92 = math.rsqrt %91 : f32
    %93 = vector.broadcast %92 : f32 to vector<8x256xf32>
    %94 = arith.mulf %84, %93 : vector<8x256xf32>
    %95 = vector.extract_strided_slice %76 {offsets = [0, 256], sizes = [8, 256], strides = [1, 1]} : vector<8x512xf32> to vector<8x256xf32>
    %96 = vector.shape_cast %95 : vector<8x256xf32> to vector<1x8x256xf32>
    %cst_13 = arith.constant dense<0.000000e+00> : vector<1xf32>
    %97 = vector.multi_reduction <add>, %96, %cst_13 [1, 2] : vector<1x8x256xf32> to vector<1xf32>
    %98 = vector.shape_cast %97 : vector<1xf32> to vector<1x1x1xf32>
    %99 = vector.extract %98[0, 0, 0] : f32 from vector<1x1x1xf32>
    %cst_14 = arith.constant 2.048000e+03 : f32
    %100 = arith.divf %99, %cst_14 : f32
    %101 = vector.broadcast %100 : f32 to vector<8x256xf32>
    %102 = arith.subf %95, %101 : vector<8x256xf32>
    %103 = arith.mulf %102, %102 : vector<8x256xf32>
    %104 = vector.shape_cast %103 : vector<8x256xf32> to vector<1x8x256xf32>
    %cst_15 = arith.constant dense<0.000000e+00> : vector<1xf32>
    %105 = vector.multi_reduction <add>, %104, %cst_15 [1, 2] : vector<1x8x256xf32> to vector<1xf32>
    %106 = vector.shape_cast %105 : vector<1xf32> to vector<1x1x1xf32>
    %107 = vector.extract %106[0, 0, 0] : f32 from vector<1x1x1xf32>
    %cst_16 = arith.constant 2.048000e+03 : f32
    %108 = arith.divf %107, %cst_16 : f32
    %cst_17 = arith.constant 9.99999974E-6 : f32
    %109 = arith.addf %108, %cst_17 : f32
    %110 = math.rsqrt %109 : f32
    %111 = vector.broadcast %110 : f32 to vector<8x256xf32>
    %112 = arith.mulf %102, %111 : vector<8x256xf32>
    %113 = tpu.concatenate %94, %112 in 1 : vector<8x256xf32>, vector<8x256xf32> -> vector<8x512xf32>
    %114 = vector.extract_strided_slice %73 {offsets = [8, 0], sizes = [8, 512], strides = [1, 1]} : vector<16x512xf32> to vector<8x512xf32>
    %115 = vector.extract_strided_slice %114 {offsets = [0, 0], sizes = [8, 256], strides = [1, 1]} : vector<8x512xf32> to vector<8x256xf32>
    %116 = vector.shape_cast %115 : vector<8x256xf32> to vector<1x8x256xf32>
    %cst_18 = arith.constant dense<0.000000e+00> : vector<1xf32>
    %117 = vector.multi_reduction <add>, %116, %cst_18 [1, 2] : vector<1x8x256xf32> to vector<1xf32>
    %118 = vector.shape_cast %117 : vector<1xf32> to vector<1x1x1xf32>
    %119 = vector.extract %118[0, 0, 0] : f32 from vector<1x1x1xf32>
    %cst_19 = arith.constant 2.048000e+03 : f32
    %120 = arith.divf %119, %cst_19 : f32
    %121 = vector.broadcast %120 : f32 to vector<8x256xf32>
    %122 = arith.subf %115, %121 : vector<8x256xf32>
    %123 = arith.mulf %122, %122 : vector<8x256xf32>
    %124 = vector.shape_cast %123 : vector<8x256xf32> to vector<1x8x256xf32>
    %cst_20 = arith.constant dense<0.000000e+00> : vector<1xf32>
    %125 = vector.multi_reduction <add>, %124, %cst_20 [1, 2] : vector<1x8x256xf32> to vector<1xf32>
    %126 = vector.shape_cast %125 : vector<1xf32> to vector<1x1x1xf32>
    %127 = vector.extract %126[0, 0, 0] : f32 from vector<1x1x1xf32>
    %cst_21 = arith.constant 2.048000e+03 : f32
    %128 = arith.divf %127, %cst_21 : f32
    %cst_22 = arith.constant 9.99999974E-6 : f32
    %129 = arith.addf %128, %cst_22 : f32
    %130 = math.rsqrt %129 : f32
    %131 = vector.broadcast %130 : f32 to vector<8x256xf32>
    %132 = arith.mulf %122, %131 : vector<8x256xf32>
    %133 = vector.extract_strided_slice %114 {offsets = [0, 256], sizes = [8, 256], strides = [1, 1]} : vector<8x512xf32> to vector<8x256xf32>
    %134 = vector.shape_cast %133 : vector<8x256xf32> to vector<1x8x256xf32>
    %cst_23 = arith.constant dense<0.000000e+00> : vector<1xf32>
    %135 = vector.multi_reduction <add>, %134, %cst_23 [1, 2] : vector<1x8x256xf32> to vector<1xf32>
    %136 = vector.shape_cast %135 : vector<1xf32> to vector<1x1x1xf32>
    %137 = vector.extract %136[0, 0, 0] : f32 from vector<1x1x1xf32>
    %cst_24 = arith.constant 2.048000e+03 : f32
    %138 = arith.divf %137, %cst_24 : f32
    %139 = vector.broadcast %138 : f32 to vector<8x256xf32>
    %140 = arith.subf %133, %139 : vector<8x256xf32>
    %141 = arith.mulf %140, %140 : vector<8x256xf32>
    %142 = vector.shape_cast %141 : vector<8x256xf32> to vector<1x8x256xf32>
    %cst_25 = arith.constant dense<0.000000e+00> : vector<1xf32>
    %143 = vector.multi_reduction <add>, %142, %cst_25 [1, 2] : vector<1x8x256xf32> to vector<1xf32>
    %144 = vector.shape_cast %143 : vector<1xf32> to vector<1x1x1xf32>
    %145 = vector.extract %144[0, 0, 0] : f32 from vector<1x1x1xf32>
    %cst_26 = arith.constant 2.048000e+03 : f32
    %146 = arith.divf %145, %cst_26 : f32
    %cst_27 = arith.constant 9.99999974E-6 : f32
    %147 = arith.addf %146, %cst_27 : f32
    %148 = math.rsqrt %147 : f32
    %149 = vector.broadcast %148 : f32 to vector<8x256xf32>
    %150 = arith.mulf %140, %149 : vector<8x256xf32>
    %151 = tpu.concatenate %132, %150 in 1 : vector<8x256xf32>, vector<8x256xf32> -> vector<8x512xf32>
    %152 = tpu.concatenate %113, %151 in 0 : vector<8x512xf32>, vector<8x512xf32> -> vector<16x512xf32>
    %153 = vector.broadcast %74 : vector<16x1xf32> to vector<16x512xf32>
    %154 = arith.mulf %152, %153 : vector<16x512xf32>
    %155 = vector.broadcast %75 : vector<16x1xf32> to vector<16x512xf32>
    %156 = arith.addf %154, %155 : vector<16x512xf32>
    %cst_28 = arith.constant 0.000000e+00 : f32
    %157 = vector.broadcast %cst_28 : f32 to vector<16x512xf32>
    %158 = arith.maximumf %156, %157 : vector<16x512xf32>
    %c0_29 = arith.constant 0 : index
    %c0_30 = arith.constant 0 : index
    %159 = vector.load %arg4[%c0_29, %c0_30] : memref<16x144xf32, #tpu.memory_space<vmem>>, vector<16x144xf32>
    %c17_i32_31 = arith.constant 17 : i32
    %160 = tpu.dynamic_rotate %158 by %c17_i32_31 dim 1 : vector<16x512xf32>, i32 -> vector<16x512xf32>
    %161 = arith.mulf %160, %30 : vector<16x512xf32>
    %c16_i32_32 = arith.constant 16 : i32
    %162 = tpu.dynamic_rotate %158 by %c16_i32_32 dim 1 : vector<16x512xf32>, i32 -> vector<16x512xf32>
    %163 = arith.mulf %162, %33 : vector<16x512xf32>
    %c15_i32_33 = arith.constant 15 : i32
    %164 = tpu.dynamic_rotate %158 by %c15_i32_33 dim 1 : vector<16x512xf32>, i32 -> vector<16x512xf32>
    %165 = arith.mulf %164, %36 : vector<16x512xf32>
    %c1_i32_34 = arith.constant 1 : i32
    %166 = tpu.dynamic_rotate %158 by %c1_i32_34 dim 1 : vector<16x512xf32>, i32 -> vector<16x512xf32>
    %167 = arith.mulf %166, %39 : vector<16x512xf32>
    %c511_i32_35 = arith.constant 511 : i32
    %168 = tpu.dynamic_rotate %158 by %c511_i32_35 dim 1 : vector<16x512xf32>, i32 -> vector<16x512xf32>
    %169 = arith.mulf %168, %42 : vector<16x512xf32>
    %c497_i32_36 = arith.constant 497 : i32
    %170 = tpu.dynamic_rotate %158 by %c497_i32_36 dim 1 : vector<16x512xf32>, i32 -> vector<16x512xf32>
    %171 = arith.mulf %170, %45 : vector<16x512xf32>
    %c496_i32_37 = arith.constant 496 : i32
    %172 = tpu.dynamic_rotate %158 by %c496_i32_37 dim 1 : vector<16x512xf32>, i32 -> vector<16x512xf32>
    %173 = arith.mulf %172, %48 : vector<16x512xf32>
    %c495_i32_38 = arith.constant 495 : i32
    %174 = tpu.dynamic_rotate %158 by %c495_i32_38 dim 1 : vector<16x512xf32>, i32 -> vector<16x512xf32>
    %175 = arith.mulf %174, %51 : vector<16x512xf32>
    %176 = tpu.concatenate %161, %163, %165, %167, %158, %169, %171, %173, %175 in 0 : vector<16x512xf32>, vector<16x512xf32>, vector<16x512xf32>, vector<16x512xf32>, vector<16x512xf32>, vector<16x512xf32>, vector<16x512xf32>, vector<16x512xf32>, vector<16x512xf32> -> vector<144x512xf32>
    %cst_39 = arith.constant dense<0.000000e+00> : vector<16x512xf32>
    %177 = tpu.matmul %159, %176, %cst_39 {dimension_numbers = #tpu.dot_dimension_numbers<[1], [0], [0], [1], [0, 0, 1, 1], [], []>} : vector<16x144xf32>, vector<144x512xf32>, vector<16x512xf32> -> vector<16x512xf32>
    %178 = vector.extract_strided_slice %2 {offsets = [0, 3], sizes = [16, 1], strides = [1, 1]} : vector<16x8xf32> to vector<16x1xf32>
    %179 = vector.broadcast %178 : vector<16x1xf32> to vector<16x512xf32>
    %180 = arith.addf %177, %179 : vector<16x512xf32>
    %181 = vector.extract_strided_slice %2 {offsets = [0, 4], sizes = [16, 1], strides = [1, 1]} : vector<16x8xf32> to vector<16x1xf32>
    %182 = vector.extract_strided_slice %2 {offsets = [0, 5], sizes = [16, 1], strides = [1, 1]} : vector<16x8xf32> to vector<16x1xf32>
    %183 = vector.extract_strided_slice %180 {offsets = [0, 0], sizes = [8, 512], strides = [1, 1]} : vector<16x512xf32> to vector<8x512xf32>
    %184 = vector.extract_strided_slice %183 {offsets = [0, 0], sizes = [8, 256], strides = [1, 1]} : vector<8x512xf32> to vector<8x256xf32>
    %185 = vector.shape_cast %184 : vector<8x256xf32> to vector<1x8x256xf32>
    %cst_40 = arith.constant dense<0.000000e+00> : vector<1xf32>
    %186 = vector.multi_reduction <add>, %185, %cst_40 [1, 2] : vector<1x8x256xf32> to vector<1xf32>
    %187 = vector.shape_cast %186 : vector<1xf32> to vector<1x1x1xf32>
    %188 = vector.extract %187[0, 0, 0] : f32 from vector<1x1x1xf32>
    %cst_41 = arith.constant 2.048000e+03 : f32
    %189 = arith.divf %188, %cst_41 : f32
    %190 = vector.broadcast %189 : f32 to vector<8x256xf32>
    %191 = arith.subf %184, %190 : vector<8x256xf32>
    %192 = arith.mulf %191, %191 : vector<8x256xf32>
    %193 = vector.shape_cast %192 : vector<8x256xf32> to vector<1x8x256xf32>
    %cst_42 = arith.constant dense<0.000000e+00> : vector<1xf32>
    %194 = vector.multi_reduction <add>, %193, %cst_42 [1, 2] : vector<1x8x256xf32> to vector<1xf32>
    %195 = vector.shape_cast %194 : vector<1xf32> to vector<1x1x1xf32>
    %196 = vector.extract %195[0, 0, 0] : f32 from vector<1x1x1xf32>
    %cst_43 = arith.constant 2.048000e+03 : f32
    %197 = arith.divf %196, %cst_43 : f32
    %cst_44 = arith.constant 9.99999974E-6 : f32
    %198 = arith.addf %197, %cst_44 : f32
    %199 = math.rsqrt %198 : f32
    %200 = vector.broadcast %199 : f32 to vector<8x256xf32>
    %201 = arith.mulf %191, %200 : vector<8x256xf32>
    %202 = vector.extract_strided_slice %183 {offsets = [0, 256], sizes = [8, 256], strides = [1, 1]} : vector<8x512xf32> to vector<8x256xf32>
    %203 = vector.shape_cast %202 : vector<8x256xf32> to vector<1x8x256xf32>
    %cst_45 = arith.constant dense<0.000000e+00> : vector<1xf32>
    %204 = vector.multi_reduction <add>, %203, %cst_45 [1, 2] : vector<1x8x256xf32> to vector<1xf32>
    %205 = vector.shape_cast %204 : vector<1xf32> to vector<1x1x1xf32>
    %206 = vector.extract %205[0, 0, 0] : f32 from vector<1x1x1xf32>
    %cst_46 = arith.constant 2.048000e+03 : f32
    %207 = arith.divf %206, %cst_46 : f32
    %208 = vector.broadcast %207 : f32 to vector<8x256xf32>
    %209 = arith.subf %202, %208 : vector<8x256xf32>
    %210 = arith.mulf %209, %209 : vector<8x256xf32>
    %211 = vector.shape_cast %210 : vector<8x256xf32> to vector<1x8x256xf32>
    %cst_47 = arith.constant dense<0.000000e+00> : vector<1xf32>
    %212 = vector.multi_reduction <add>, %211, %cst_47 [1, 2] : vector<1x8x256xf32> to vector<1xf32>
    %213 = vector.shape_cast %212 : vector<1xf32> to vector<1x1x1xf32>
    %214 = vector.extract %213[0, 0, 0] : f32 from vector<1x1x1xf32>
    %cst_48 = arith.constant 2.048000e+03 : f32
    %215 = arith.divf %214, %cst_48 : f32
    %cst_49 = arith.constant 9.99999974E-6 : f32
    %216 = arith.addf %215, %cst_49 : f32
    %217 = math.rsqrt %216 : f32
    %218 = vector.broadcast %217 : f32 to vector<8x256xf32>
    %219 = arith.mulf %209, %218 : vector<8x256xf32>
    %220 = tpu.concatenate %201, %219 in 1 : vector<8x256xf32>, vector<8x256xf32> -> vector<8x512xf32>
    %221 = vector.extract_strided_slice %180 {offsets = [8, 0], sizes = [8, 512], strides = [1, 1]} : vector<16x512xf32> to vector<8x512xf32>
    %222 = vector.extract_strided_slice %221 {offsets = [0, 0], sizes = [8, 256], strides = [1, 1]} : vector<8x512xf32> to vector<8x256xf32>
    %223 = vector.shape_cast %222 : vector<8x256xf32> to vector<1x8x256xf32>
    %cst_50 = arith.constant dense<0.000000e+00> : vector<1xf32>
    %224 = vector.multi_reduction <add>, %223, %cst_50 [1, 2] : vector<1x8x256xf32> to vector<1xf32>
    %225 = vector.shape_cast %224 : vector<1xf32> to vector<1x1x1xf32>
    %226 = vector.extract %225[0, 0, 0] : f32 from vector<1x1x1xf32>
    %cst_51 = arith.constant 2.048000e+03 : f32
    %227 = arith.divf %226, %cst_51 : f32
    %228 = vector.broadcast %227 : f32 to vector<8x256xf32>
    %229 = arith.subf %222, %228 : vector<8x256xf32>
    %230 = arith.mulf %229, %229 : vector<8x256xf32>
    %231 = vector.shape_cast %230 : vector<8x256xf32> to vector<1x8x256xf32>
    %cst_52 = arith.constant dense<0.000000e+00> : vector<1xf32>
    %232 = vector.multi_reduction <add>, %231, %cst_52 [1, 2] : vector<1x8x256xf32> to vector<1xf32>
    %233 = vector.shape_cast %232 : vector<1xf32> to vector<1x1x1xf32>
    %234 = vector.extract %233[0, 0, 0] : f32 from vector<1x1x1xf32>
    %cst_53 = arith.constant 2.048000e+03 : f32
    %235 = arith.divf %234, %cst_53 : f32
    %cst_54 = arith.constant 9.99999974E-6 : f32
    %236 = arith.addf %235, %cst_54 : f32
    %237 = math.rsqrt %236 : f32
    %238 = vector.broadcast %237 : f32 to vector<8x256xf32>
    %239 = arith.mulf %229, %238 : vector<8x256xf32>
    %240 = vector.extract_strided_slice %221 {offsets = [0, 256], sizes = [8, 256], strides = [1, 1]} : vector<8x512xf32> to vector<8x256xf32>
    %241 = vector.shape_cast %240 : vector<8x256xf32> to vector<1x8x256xf32>
    %cst_55 = arith.constant dense<0.000000e+00> : vector<1xf32>
    %242 = vector.multi_reduction <add>, %241, %cst_55 [1, 2] : vector<1x8x256xf32> to vector<1xf32>
    %243 = vector.shape_cast %242 : vector<1xf32> to vector<1x1x1xf32>
    %244 = vector.extract %243[0, 0, 0] : f32 from vector<1x1x1xf32>
    %cst_56 = arith.constant 2.048000e+03 : f32
    %245 = arith.divf %244, %cst_56 : f32
    %246 = vector.broadcast %245 : f32 to vector<8x256xf32>
    %247 = arith.subf %240, %246 : vector<8x256xf32>
    %248 = arith.mulf %247, %247 : vector<8x256xf32>
    %249 = vector.shape_cast %248 : vector<8x256xf32> to vector<1x8x256xf32>
    %cst_57 = arith.constant dense<0.000000e+00> : vector<1xf32>
    %250 = vector.multi_reduction <add>, %249, %cst_57 [1, 2] : vector<1x8x256xf32> to vector<1xf32>
    %251 = vector.shape_cast %250 : vector<1xf32> to vector<1x1x1xf32>
    %252 = vector.extract %251[0, 0, 0] : f32 from vector<1x1x1xf32>
    %cst_58 = arith.constant 2.048000e+03 : f32
    %253 = arith.divf %252, %cst_58 : f32
    %cst_59 = arith.constant 9.99999974E-6 : f32
    %254 = arith.addf %253, %cst_59 : f32
    %255 = math.rsqrt %254 : f32
    %256 = vector.broadcast %255 : f32 to vector<8x256xf32>
    %257 = arith.mulf %247, %256 : vector<8x256xf32>
    %258 = tpu.concatenate %239, %257 in 1 : vector<8x256xf32>, vector<8x256xf32> -> vector<8x512xf32>
    %259 = tpu.concatenate %220, %258 in 0 : vector<8x512xf32>, vector<8x512xf32> -> vector<16x512xf32>
    %260 = vector.broadcast %181 : vector<16x1xf32> to vector<16x512xf32>
    %261 = arith.mulf %259, %260 : vector<16x512xf32>
    %262 = vector.broadcast %182 : vector<16x1xf32> to vector<16x512xf32>
    %263 = arith.addf %261, %262 : vector<16x512xf32>
    %cst_60 = arith.constant 0.000000e+00 : f32
    %264 = vector.broadcast %cst_60 : f32 to vector<16x512xf32>
    %265 = arith.maximumf %263, %264 : vector<16x512xf32>
    %c0_61 = arith.constant 0 : index
    %c0_62 = arith.constant 0 : index
    %266 = vector.load %arg5[%c0_61, %c0_62] : memref<8x144xf32, #tpu.memory_space<vmem>>, vector<8x144xf32>
    %c17_i32_63 = arith.constant 17 : i32
    %267 = tpu.dynamic_rotate %265 by %c17_i32_63 dim 1 : vector<16x512xf32>, i32 -> vector<16x512xf32>
    %268 = arith.mulf %267, %30 : vector<16x512xf32>
    %c16_i32_64 = arith.constant 16 : i32
    %269 = tpu.dynamic_rotate %265 by %c16_i32_64 dim 1 : vector<16x512xf32>, i32 -> vector<16x512xf32>
    %270 = arith.mulf %269, %33 : vector<16x512xf32>
    %c15_i32_65 = arith.constant 15 : i32
    %271 = tpu.dynamic_rotate %265 by %c15_i32_65 dim 1 : vector<16x512xf32>, i32 -> vector<16x512xf32>
    %272 = arith.mulf %271, %36 : vector<16x512xf32>
    %c1_i32_66 = arith.constant 1 : i32
    %273 = tpu.dynamic_rotate %265 by %c1_i32_66 dim 1 : vector<16x512xf32>, i32 -> vector<16x512xf32>
    %274 = arith.mulf %273, %39 : vector<16x512xf32>
    %c511_i32_67 = arith.constant 511 : i32
    %275 = tpu.dynamic_rotate %265 by %c511_i32_67 dim 1 : vector<16x512xf32>, i32 -> vector<16x512xf32>
    %276 = arith.mulf %275, %42 : vector<16x512xf32>
    %c497_i32_68 = arith.constant 497 : i32
    %277 = tpu.dynamic_rotate %265 by %c497_i32_68 dim 1 : vector<16x512xf32>, i32 -> vector<16x512xf32>
    %278 = arith.mulf %277, %45 : vector<16x512xf32>
    %c496_i32_69 = arith.constant 496 : i32
    %279 = tpu.dynamic_rotate %265 by %c496_i32_69 dim 1 : vector<16x512xf32>, i32 -> vector<16x512xf32>
    %280 = arith.mulf %279, %48 : vector<16x512xf32>
    %c495_i32_70 = arith.constant 495 : i32
    %281 = tpu.dynamic_rotate %265 by %c495_i32_70 dim 1 : vector<16x512xf32>, i32 -> vector<16x512xf32>
    %282 = arith.mulf %281, %51 : vector<16x512xf32>
    %283 = tpu.concatenate %268, %270, %272, %274, %265, %276, %278, %280, %282 in 0 : vector<16x512xf32>, vector<16x512xf32>, vector<16x512xf32>, vector<16x512xf32>, vector<16x512xf32>, vector<16x512xf32>, vector<16x512xf32>, vector<16x512xf32>, vector<16x512xf32> -> vector<144x512xf32>
    %cst_71 = arith.constant dense<0.000000e+00> : vector<8x512xf32>
    %284 = tpu.matmul %266, %283, %cst_71 {dimension_numbers = #tpu.dot_dimension_numbers<[1], [0], [0], [1], [0, 0, 1, 1], [], []>} : vector<8x144xf32>, vector<144x512xf32>, vector<8x512xf32> -> vector<8x512xf32>
    %285 = vector.extract_strided_slice %2 {offsets = [0, 6], sizes = [8, 1], strides = [1, 1]} : vector<16x8xf32> to vector<8x1xf32>
    %286 = vector.broadcast %285 : vector<8x1xf32> to vector<8x512xf32>
    %287 = arith.addf %284, %286 : vector<8x512xf32>
    %c0_72 = arith.constant 0 : index
    %c0_73 = arith.constant 0 : index
    %c0_74 = arith.constant 0 : index
    %288 = vector.load %arg7[%c0_72, %c0_73, %c0_74] : memref<1x8x512xf32, #tpu.memory_space<vmem>>, vector<1x8x512xf32>
    %289 = vector.shape_cast %288 : vector<1x8x512xf32> to vector<8x512xf32>
    %290 = vector.shape_cast %287 : vector<8x512xf32> to vector<1x8x512xf32>
    tpu.vector_store %arg7[%c0_72, %c0_73, %c0_74], %290 {strides = array<i32>} : memref<1x8x512xf32, #tpu.memory_space<vmem>>, vector<1x8x512xf32>,
    return
  }
  func.func @transform_0(%arg0: i32) -> (i32, i32, i32) {
    %c0_i32 = arith.constant 0 : i32
    %c0_i32_0 = arith.constant 0 : i32
    %c0_i32_1 = arith.constant 0 : i32
    return %arg0, %c0_i32, %c0_i32_0 : i32, i32, i32
  }
  func.func @transform_1(%arg0: i32) -> (i32, i32) {
    %c0_i32 = arith.constant 0 : i32
    %c0_i32_0 = arith.constant 0 : i32
    %c0_i32_1 = arith.constant 0 : i32
    return %c0_i32, %c0_i32_0 : i32, i32
  }
  func.func @transform_2(%arg0: i32) -> (i32, i32) {
    %c0_i32 = arith.constant 0 : i32
    %c0_i32_0 = arith.constant 0 : i32
    %c0_i32_1 = arith.constant 0 : i32
    return %c0_i32, %c0_i32_0 : i32, i32
  }
  func.func @transform_3(%arg0: i32) -> (i32, i32) {
    %c0_i32 = arith.constant 0 : i32
    %c0_i32_0 = arith.constant 0 : i32
    %c0_i32_1 = arith.constant 0 : i32
    return %c0_i32, %c0_i32_0 : i32, i32
  }
  func.func @transform_4(%arg0: i32) -> (i32, i32) {
    %c0_i32 = arith.constant 0 : i32
    %c0_i32_0 = arith.constant 0 : i32
    %c0_i32_1 = arith.constant 0 : i32
    return %c0_i32, %c0_i32_0 : i32, i32
  }
  func.func @transform_5(%arg0: i32) -> (i32, i32) {
    %c0_i32 = arith.constant 0 : i32
    %c0_i32_0 = arith.constant 0 : i32
    %c0_i32_1 = arith.constant 0 : i32
    return %c0_i32, %c0_i32_0 : i32, i32
  }
  func.func @transform_6(%arg0: i32) -> (i32, i32, i32) {
    %c0_i32 = arith.constant 0 : i32
    %c0_i32_0 = arith.constant 0 : i32
    %c0_i32_1 = arith.constant 0 : i32
    return %arg0, %c0_i32, %c0_i32_0 : i32, i32, i32
  }
}

</mosaic_0001>

<llo_original>
// kernel: tpu_custom_call.1
$region0: #{tpu_custom_call.1}
  #allocation0 [shape = 'u32[]', space=smem, size = 0x4, offset = 0x4, fixed_abs, tag = 'smem constant byte address 0x4 - core index']
  #allocation1 [shape = 'u32[144,128]{1,0:T(1,128)}', space=vmem, size = 0x12000, scoped, tag = 'internal scratch']
  %s0 = inlined_call_operand.hbm [shape: f32[1,8,512], index: 0, kind: input, shape index: {}]
  %s1 = inlined_call_operand.hbm [shape: f32[8,512], index: 1, kind: input, shape index: {}]
  %s2 = inlined_call_operand.vmem [shape: f32[16,72], index: 2, kind: input, shape index: {}]
  %s3 = inlined_call_operand.hbm [shape: f32[16,144], index: 3, kind: input, shape index: {}]
  %s4 = inlined_call_operand.hbm [shape: f32[8,144], index: 4, kind: input, shape index: {}]
  %s5 = inlined_call_operand.vmem [shape: f32[16,8], index: 5, kind: input, shape index: {}]
  %s6 = inlined_call_operand.hbm [shape: f32[1,8,512], index: 6, kind: output, shape index: {}]
  %s7 = sld [smem:[#allocation0]]
  $region50: #{tpu_custom_call.1} parent=0
    _
  %s9 = ssub.s32 1, %s7
  %s10 = scalar_select 0, %s9, %s7
  $region1: #{tpu_custom_call.1} parent=0
    #allocation2 [shape = 'u8[16384]{0}', space=vmem, size = 0x4000, scoped, tag = 'input window, operand 0, single buffered']
    #allocation3 [shape = 's32[1]{0}', space=sflag, size = 0x4, scoped, tag = 'scoped memory for tpu_custom_call.1']
    #allocation4 [shape = 's32[1]{0}', space=sflag, size = 0x4, scoped, tag = 'scoped memory for tpu_custom_call.1']
    #allocation5 [shape = 'u8[16384]{0}', space=vmem, size = 0x4000, scoped, tag = 'input window, operand 1, single buffered']
    #allocation6 [shape = 's32[1]{0}', space=sflag, size = 0x4, scoped, tag = 'scoped memory for tpu_custom_call.1']
    #allocation7 [shape = 'u8[16384]{0}', space=vmem, size = 0x4000, scoped, tag = 'input window, operand 3, single buffered']
    #allocation8 [shape = 'u8[8192]{0}', space=vmem, size = 0x2000, scoped, tag = 'input window, operand 4, single buffered']
    #allocation9 [shape = 's32[1]{0}', space=sflag, size = 0x4, scoped, tag = 'scoped memory for tpu_custom_call.1']
    #allocation10 [shape = 'u8[16384]{0}', space=vmem, size = 0x4000, scoped, tag = 'output window, operand 0, single buffered']
    %11 = vsyncpa [#allocation3], 0
    %12 = vsyncpa [#allocation6], 0
    %13 = vsyncpa [#allocation9], 0
    %14 = vsyncpa [#allocation4], 0
    // Predicated region
    $region2: #{tpu_custom_call.1} parent=1 // pred_check
      _
    $region3: #{tpu_custom_call.1} parent=1 // pred_check_branch
      %16 = sbr.rel (0) target = $region5
    $region4: #{tpu_custom_call.1} parent=1 // pred_region
      %s18 = ssub.s32 512, 512
      %19 = vsyncadd [#allocation3], %s18
      %s21 = sshll.u32 [#allocation2], 4
      %s22 = int_to_ptr.vmem [resolvable:$true] %s21
      %24 = dma.hbm_to_vmem [thread:$0]  %s0, 512, %s22, [#allocation3]
    $region5: #{tpu_custom_call.1} parent=1 // pred_fallthru
      _
    // Predicated region
    $region6: #{tpu_custom_call.1} parent=1 // pred_check
      _
    $region7: #{tpu_custom_call.1} parent=1 // pred_check_branch
      %26 = sbr.rel (0) target = $region9
    $region8: #{tpu_custom_call.1} parent=1 // pred_region
      %s28 = ssub.s32 512, 512
      %29 = vsyncadd [#allocation6], %s28
      %s31 = sshll.u32 [#allocation5], 4
      %s32 = int_to_ptr.vmem [resolvable:$true] %s31
      %34 = dma.hbm_to_vmem [thread:$0]  %s1, 512, %s32, [#allocation6]
    $region9: #{tpu_custom_call.1} parent=1 // pred_fallthru
      _
    // Predicated region
    $region10: #{tpu_custom_call.1} parent=1 // pred_check
      _
    $region11: #{tpu_custom_call.1} parent=1 // pred_check_branch
      %36 = sbr.rel (0) target = $region13
    $region12: #{tpu_custom_call.1} parent=1 // pred_region
      _
    $region13: #{tpu_custom_call.1} parent=1 // pred_fallthru
      _
    // Predicated region
    $region14: #{tpu_custom_call.1} parent=1 // pred_check
      _
    $region15: #{tpu_custom_call.1} parent=1 // pred_check_branch
      %38 = sbr.rel (0) target = $region17
    $region16: #{tpu_custom_call.1} parent=1 // pred_region
      %s40 = ssub.s32 512, 512
      %41 = vsyncadd [#allocation6], %s40
      %s42 = sshll.u32 [#allocation7], 4
      %s43 = int_to_ptr.vmem [resolvable:$true] %s42
      %48 = dma.hbm_to_vmem [thread:$0]  %s3, 512, %s43, [#allocation6], 256, 256, 16
    $region17: #{tpu_custom_call.1} parent=1 // pred_fallthru
      _
    // Predicated region
    $region18: #{tpu_custom_call.1} parent=1 // pred_check
      _
    $region19: #{tpu_custom_call.1} parent=1 // pred_check_branch
      %50 = sbr.rel (0) target = $region21
    $region20: #{tpu_custom_call.1} parent=1 // pred_region
      %s52 = ssub.s32 256, 256
      %53 = vsyncadd [#allocation9], %s52
      %s55 = sshll.u32 [#allocation8], 4
      %s56 = int_to_ptr.vmem [resolvable:$true] %s55
      %58 = dma.hbm_to_vmem [thread:$0]  %s4, 256, %s56, [#allocation9]
    $region21: #{tpu_custom_call.1} parent=1 // pred_fallthru
      _
    // Predicated region
    $region22: #{tpu_custom_call.1} parent=1 // pred_check
      _
    $region23: #{tpu_custom_call.1} parent=1 // pred_check_branch
      %60 = sbr.rel (0) target = $region25
    $region24: #{tpu_custom_call.1} parent=1 // pred_region
      _
    $region25: #{tpu_custom_call.1} parent=1 // pred_fallthru
      _
    // Predicated region
    $region26: #{tpu_custom_call.1} parent=1 // pred_check
      _
    $region27: #{tpu_custom_call.1} parent=1 // pred_check_branch
      %62 = sbr.rel (0) target = $region29
    $region28: #{tpu_custom_call.1} parent=1 // pred_region
      %63 = dma.done [#allocation3], 512
    $region29: #{tpu_custom_call.1} parent=1 // pred_fallthru
      _
    // Predicated region
    $region30: #{tpu_custom_call.1} parent=1 // pred_check
      _
    $region31: #{tpu_custom_call.1} parent=1 // pred_check_branch
      %65 = sbr.rel (0) target = $region33
    $region32: #{tpu_custom_call.1} parent=1 // pred_region
      %66 = dma.done [#allocation6], 512
    $region33: #{tpu_custom_call.1} parent=1 // pred_fallthru
      _
    // Predicated region
    $region34: #{tpu_custom_call.1} parent=1 // pred_check
      _
    $region35: #{tpu_custom_call.1} parent=1 // pred_check_branch
      %68 = sbr.rel (0) target = $region37
    $region36: #{tpu_custom_call.1} parent=1 // pred_region
      %69 = dma.done [#allocation6], 512
    $region37: #{tpu_custom_call.1} parent=1 // pred_fallthru
      _
    // Predicated region
    $region38: #{tpu_custom_call.1} parent=1 // pred_check
      _
    $region39: #{tpu_custom_call.1} parent=1 // pred_check_branch
      %71 = sbr.rel (0) target = $region41
    $region40: #{tpu_custom_call.1} parent=1 // pred_region
      %72 = dma.done [#allocation9], 256
    $region41: #{tpu_custom_call.1} parent=1 // pred_fallthru
      _
    %v73 = vld [vmem:[#allocation2] sm:$0xff]
    %v74 = vld [vmem:[#allocation2 + $0x8] sm:$0xff]
    %v75 = vld [vmem:[#allocation2 + $0x10] sm:$0xff]
    %v76 = vld [vmem:[#allocation2 + $0x18] sm:$0xff]
    %v77 = vld [vmem:[%s5] sm:$0xff]
    %v78 = vld [vmem:[%s5 + $0x8] sm:$0xff]
    %v79 = vld [vmem:[#allocation5] sm:$0xff]
    %v80 = vld [vmem:[#allocation5 + $0x8] sm:$0xff]
    %v81 = vld [vmem:[#allocation5 + $0x10] sm:$0xff]
    %v82 = vld [vmem:[#allocation5 + $0x18] sm:$0xff]
    %v83 = vlaneseq
    %v84 = vshrl.u32 %v83, 7
    %v85 = vsub.s32 0, %v84
    %v86 = vrot.slane %v79, %v85
    %v87 = vlaneseq
    %v88 = vshrl.u32 %v87, 7
    %v89 = vsub.s32 0, %v88
    %v90 = vrot.slane %v80, %v89
    %v91 = vlaneseq
    %v92 = vshrl.u32 %v91, 7
    %v93 = vsub.s32 0, %v92
    %v94 = vrot.slane %v81, %v93
    %v95 = vlaneseq
    %v96 = vshrl.u32 %v95, 7
    %v97 = vsub.s32 0, %v96
    %v98 = vrot.slane %v82, %v97
    %v99 = vlaneseq
    %v100 = vshrl.u32 %v99, 7
    %v101 = vsub.s32 1, %v100
    %v102 = vrot.slane %v79, %v101
    %v103 = vlaneseq
    %v104 = vshrl.u32 %v103, 7
    %v105 = vsub.s32 1, %v104
    %v106 = vrot.slane %v80, %v105
    %v107 = vlaneseq
    %v108 = vshrl.u32 %v107, 7
    %v109 = vsub.s32 1, %v108
    %v110 = vrot.slane %v81, %v109
    %v111 = vlaneseq
    %v112 = vshrl.u32 %v111, 7
    %v113 = vsub.s32 1, %v112
    %v114 = vrot.slane %v82, %v113
    %v115 = vlaneseq
    %v116 = vshrl.u32 %v115, 7
    %v117 = vsub.s32 2, %v116
    %v118 = vrot.slane %v79, %v117
    %v119 = vlaneseq
    %v120 = vshrl.u32 %v119, 7
    %v121 = vsub.s32 2, %v120
    %v122 = vrot.slane %v80, %v121
    %v123 = vlaneseq
    %v124 = vshrl.u32 %v123, 7
    %v125 = vsub.s32 2, %v124
    %v126 = vrot.slane %v81, %v125
    %v127 = vlaneseq
    %v128 = vshrl.u32 %v127, 7
    %v129 = vsub.s32 2, %v128
    %v130 = vrot.slane %v82, %v129
    %v131 = vlaneseq
    %v132 = vshrl.u32 %v131, 7
    %v133 = vsub.s32 3, %v132
    %v134 = vrot.slane %v79, %v133
    %v135 = vlaneseq
    %v136 = vshrl.u32 %v135, 7
    %v137 = vsub.s32 3, %v136
    %v138 = vrot.slane %v80, %v137
    %v139 = vlaneseq
    %v140 = vshrl.u32 %v139, 7
    %v141 = vsub.s32 3, %v140
    %v142 = vrot.slane %v81, %v141
    %v143 = vlaneseq
    %v144 = vshrl.u32 %v143, 7
    %v145 = vsub.s32 3, %v144
    %v146 = vrot.slane %v82, %v145
    %v147 = vlaneseq
    %v148 = vshrl.u32 %v147, 7
    %v149 = vsub.s32 4, %v148
    %v150 = vrot.slane %v79, %v149
    %v151 = vlaneseq
    %v152 = vshrl.u32 %v151, 7
    %v153 = vsub.s32 4, %v152
    %v154 = vrot.slane %v80, %v153
    %v155 = vlaneseq
    %v156 = vshrl.u32 %v155, 7
    %v157 = vsub.s32 4, %v156
    %v158 = vrot.slane %v81, %v157
    %v159 = vlaneseq
    %v160 = vshrl.u32 %v159, 7
    %v161 = vsub.s32 4, %v160
    %v162 = vrot.slane %v82, %v161
    %v163 = vlaneseq
    %v164 = vshrl.u32 %v163, 7
    %v165 = vsub.s32 5, %v164
    %v166 = vrot.slane %v79, %v165
    %v167 = vlaneseq
    %v168 = vshrl.u32 %v167, 7
    %v169 = vsub.s32 5, %v168
    %v170 = vrot.slane %v80, %v169
    %v171 = vlaneseq
    %v172 = vshrl.u32 %v171, 7
    %v173 = vsub.s32 5, %v172
    %v174 = vrot.slane %v81, %v173
    %v175 = vlaneseq
    %v176 = vshrl.u32 %v175, 7
    %v177 = vsub.s32 5, %v176
    %v178 = vrot.slane %v82, %v177
    %v179 = vlaneseq
    %v180 = vshrl.u32 %v179, 7
    %v181 = vsub.s32 6, %v180
    %v182 = vrot.slane %v79, %v181
    %v183 = vlaneseq
    %v184 = vshrl.u32 %v183, 7
    %v185 = vsub.s32 6, %v184
    %v186 = vrot.slane %v80, %v185
    %v187 = vlaneseq
    %v188 = vshrl.u32 %v187, 7
    %v189 = vsub.s32 6, %v188
    %v190 = vrot.slane %v81, %v189
    %v191 = vlaneseq
    %v192 = vshrl.u32 %v191, 7
    %v193 = vsub.s32 6, %v192
    %v194 = vrot.slane %v82, %v193
    %v195 = vlaneseq
    %v196 = vshrl.u32 %v195, 7
    %v197 = vsub.s32 7, %v196
    %v198 = vrot.slane %v79, %v197
    %v199 = vlaneseq
    %v200 = vshrl.u32 %v199, 7
    %v201 = vsub.s32 7, %v200
    %v202 = vrot.slane %v80, %v201
    %v203 = vlaneseq
    %v204 = vshrl.u32 %v203, 7
    %v205 = vsub.s32 7, %v204
    %v206 = vrot.slane %v81, %v205
    %v207 = vlaneseq
    %v208 = vshrl.u32 %v207, 7
    %v209 = vsub.s32 7, %v208
    %v210 = vrot.slane %v82, %v209
    %v211 = vld [vmem:[%s2] sm:$0xff]
    %v212 = vld [vmem:[%s2 + $0x8] sm:$0xff]
    %213 = vrot.lane.b32.xlu0 %v73, 17
    %v214 = vpop.permute.xlu0 %213
    %215 = vrot.lane.b32.xlu0 %v74, 17
    %v216 = vpop.permute.xlu0 %215
    %217 = vrot.lane.b32.xlu0 %v75, 17
    %v218 = vpop.permute.xlu0 %217
    %219 = vrot.lane.b32.xlu0 %v76, 17
    %v220 = vpop.permute.xlu0 %219
    %v221 = vlaneseq
    %v222 = vand.u32 %v221, 127
    %vm223 = vcmp.lt.s32.totalorder %v222, 17
    %v224 = vsel %vm223, %v218, %v220
    %v225 = vsel %vm223, %v216, %v218
    %v226 = vsel %vm223, %v214, %v216
    %v227 = vsel %vm223, %v220, %v214
    %v228 = vmul.f32 %v227, %v86
    %v229 = vmul.f32 %v226, %v90
    %v230 = vmul.f32 %v225, %v94
    %v231 = vmul.f32 %v224, %v98
    %232 = vrot.lane.b32.xlu0 %v73, 16
    %v233 = vpop.permute.xlu0 %232
    %234 = vrot.lane.b32.xlu0 %v74, 16
    %v235 = vpop.permute.xlu0 %234
    %236 = vrot.lane.b32.xlu0 %v75, 16
    %v237 = vpop.permute.xlu0 %236
    %238 = vrot.lane.b32.xlu0 %v76, 16
    %v239 = vpop.permute.xlu0 %238
    %vm240 = vcmp.lt.s32.totalorder %v222, 16
    %v241 = vsel %vm240, %v237, %v239
    %v242 = vsel %vm240, %v235, %v237
    %v243 = vsel %vm240, %v233, %v235
    %v244 = vsel %vm240, %v239, %v233
    %v245 = vmul.f32 %v244, %v102
    %v246 = vmul.f32 %v243, %v106
    %v247 = vmul.f32 %v242, %v110
    %v248 = vmul.f32 %v241, %v114
    %249 = vrot.lane.b32.xlu0 %v73, 15
    %v250 = vpop.permute.xlu0 %249
    %251 = vrot.lane.b32.xlu0 %v74, 15
    %v252 = vpop.permute.xlu0 %251
    %253 = vrot.lane.b32.xlu0 %v75, 15
    %v254 = vpop.permute.xlu0 %253
    %255 = vrot.lane.b32.xlu0 %v76, 15
    %v256 = vpop.permute.xlu0 %255
    %vm257 = vcmp.lt.s32.totalorder %v222, 15
    %v258 = vsel %vm257, %v254, %v256
    %v259 = vsel %vm257, %v252, %v254
    %v260 = vsel %vm257, %v250, %v252
    %v261 = vsel %vm257, %v256, %v250
    %v262 = vmul.f32 %v261, %v118
    %v263 = vmul.f32 %v260, %v122
    %v264 = vmul.f32 %v259, %v126
    %v265 = vmul.f32 %v258, %v130
    %266 = vrot.lane.b32.xlu0 %v73, 1
    %v267 = vpop.permute.xlu0 %266
    %268 = vrot.lane.b32.xlu0 %v74, 1
    %v269 = vpop.permute.xlu0 %268
    %270 = vrot.lane.b32.xlu0 %v75, 1
    %v271 = vpop.permute.xlu0 %270
    %272 = vrot.lane.b32.xlu0 %v76, 1
    %v273 = vpop.permute.xlu0 %272
    %vm274 = vcmp.lt.s32.totalorder %v222, 1
    %v275 = vsel %vm274, %v271, %v273
    %v276 = vsel %vm274, %v269, %v271
    %v277 = vsel %vm274, %v267, %v269
    %v278 = vsel %vm274, %v273, %v267
    %v279 = vmul.f32 %v278, %v134
    %v280 = vmul.f32 %v277, %v138
    %v281 = vmul.f32 %v276, %v142
    %v282 = vmul.f32 %v275, %v146
    %283 = vrot.lane.b32.xlu0 %v73, 127
    %v284 = vpop.permute.xlu0 %283
    %285 = vrot.lane.b32.xlu0 %v74, 127
    %v286 = vpop.permute.xlu0 %285
    %287 = vrot.lane.b32.xlu0 %v75, 127
    %v288 = vpop.permute.xlu0 %287
    %289 = vrot.lane.b32.xlu0 %v76, 127
    %v290 = vpop.permute.xlu0 %289
    %vm291 = vcmp.lt.s32.totalorder %v222, 127
    %v292 = vsel %vm291, %v288, %v290
    %v293 = vsel %vm291, %v286, %v288
    %v294 = vsel %vm291, %v284, %v286
    %v295 = vsel %vm291, %v290, %v284
    %v296 = vmul.f32 %v294, %v150
    %v297 = vmul.f32 %v293, %v154
    %v298 = vmul.f32 %v292, %v158
    %v299 = vmul.f32 %v295, %v162
    %300 = vrot.lane.b32.xlu0 %v73, 113
    %v301 = vpop.permute.xlu0 %300
    %302 = vrot.lane.b32.xlu0 %v74, 113
    %v303 = vpop.permute.xlu0 %302
    %304 = vrot.lane.b32.xlu0 %v75, 113
    %v305 = vpop.permute.xlu0 %304
    %306 = vrot.lane.b32.xlu0 %v76, 113
    %v307 = vpop.permute.xlu0 %306
    %vm308 = vcmp.lt.s32.totalorder %v222, 113
    %v309 = vsel %vm308, %v305, %v307
    %v310 = vsel %vm308, %v303, %v305
    %v311 = vsel %vm308, %v301, %v303
    %v312 = vsel %vm308, %v307, %v301
    %v313 = vmul.f32 %v311, %v166
    %v314 = vmul.f32 %v310, %v170
    %v315 = vmul.f32 %v309, %v174
    %v316 = vmul.f32 %v312, %v178
    %317 = vrot.lane.b32.xlu0 %v73, 112
    %v318 = vpop.permute.xlu0 %317
    %319 = vrot.lane.b32.xlu0 %v74, 112
    %v320 = vpop.permute.xlu0 %319
    %321 = vrot.lane.b32.xlu0 %v75, 112
    %v322 = vpop.permute.xlu0 %321
    %323 = vrot.lane.b32.xlu0 %v76, 112
    %v324 = vpop.permute.xlu0 %323
    %vm325 = vcmp.lt.s32.totalorder %v222, 112
    %v326 = vsel %vm325, %v322, %v324
    %v327 = vsel %vm325, %v320, %v322
    %v328 = vsel %vm325, %v318, %v320
    %v329 = vsel %vm325, %v324, %v318
    %v330 = vmul.f32 %v328, %v182
    %v331 = vmul.f32 %v327, %v186
    %v332 = vmul.f32 %v326, %v190
    %v333 = vmul.f32 %v329, %v194
    %334 = vrot.lane.b32.xlu0 %v73, 111
    %v335 = vpop.permute.xlu0 %334
    %336 = vrot.lane.b32.xlu0 %v74, 111
    %v337 = vpop.permute.xlu0 %336
    %338 = vrot.lane.b32.xlu0 %v75, 111
    %v339 = vpop.permute.xlu0 %338
    %340 = vrot.lane.b32.xlu0 %v76, 111
    %v341 = vpop.permute.xlu0 %340
    %vm342 = vcmp.lt.s32.totalorder %v222, 111
    %v343 = vsel %vm342, %v339, %v341
    %v344 = vsel %vm342, %v337, %v339
    %v345 = vsel %vm342, %v335, %v337
    %v346 = vsel %vm342, %v341, %v335
    %v347 = vmul.f32 %v345, %v198
    %v348 = vmul.f32 %v344, %v202
    %v349 = vmul.f32 %v343, %v206
    %v350 = vmul.f32 %v346, %v210
    %352 = vset.pattern.permute.xlu0 0
    %353 = vperm.xlu0 %352, %v77
    %v354 = vpop.permute.xlu0 %353
    %357 = vset.pattern.permute.xlu0 0
    %358 = vperm.xlu0 %357, %v78
    %v359 = vpop.permute.xlu0 %358
    %vm361 = vcmask 588800
    %v363 = vsel %vm361, %v211, 0
    %v366 = vsel %vm361, %v212, 0
    %368 = vmatprep.subr.mxu0 0.0
    %369 = vmatpush1.msra.mxu0 0.0
    %370 = vmatprep.subr.mxu0 0.0
    %371 = vmatpush1.msra.mxu0 0.0
    %372 = vmatprep.subr.mxu0 0.0
    %373 = vmatpush1.msra.mxu0 0.0
    %374 = vmatprep.subr.mxu0 0.0
    %375 = vmatpush1.msra.mxu0 0.0
    %376 = vmatprep.subr.mxu0 0.0
    %377 = vmatpush1.msra.mxu0 0.0
    %378 = vmatprep.subr.mxu0 0.0
    %379 = vmatpush1.msra.mxu0 0.0
    %380 = vmatprep.subr.mxu0 0.0
    %381 = vmatpush1.msra.mxu0 0.0
    %382 = vmatprep.subr.mxu0 %v348
    %383 = vmatpush1.msra.mxu0 %v347
    %384 = vmatprep.subr.mxu0 %v331
    %385 = vmatpush1.msra.mxu0 %v330
    %386 = vmatprep.subr.mxu0 %v314
    %387 = vmatpush1.msra.mxu0 %v313
    %388 = vmatprep.subr.mxu0 %v297
    %389 = vmatpush1.msra.mxu0 %v296
    %390 = vmatprep.subr.mxu0 %v74
    %391 = vmatpush1.msra.mxu0 %v73
    %392 = vmatprep.subr.mxu0 %v280
    %393 = vmatpush1.msra.mxu0 %v279
    %394 = vmatprep.subr.mxu0 %v263
    %395 = vmatpush1.msra.mxu0 %v262
    %396 = vmatprep.subr.mxu0 %v246
    %397 = vmatpush1.msra.mxu0 %v245
    %398 = vmatprep.subr.mxu0 %v229
    %399 = vmatpush1.msra.mxu0 %v228
    %400 = vmatprep.subr.mxu0 0.0
    %401 = vmatpush2.msra.mxu0 0.0
    %402 = vmatprep.subr.mxu0 0.0
    %403 = vmatpush2.msra.mxu0 0.0
    %404 = vmatprep.subr.mxu0 0.0
    %405 = vmatpush2.msra.mxu0 0.0
    %406 = vmatprep.subr.mxu0 0.0
    %407 = vmatpush2.msra.mxu0 0.0
    %408 = vmatprep.subr.mxu0 0.0
    %409 = vmatpush2.msra.mxu0 0.0
    %410 = vmatprep.subr.mxu0 0.0
    %411 = vmatpush2.msra.mxu0 0.0
    %412 = vmatprep.subr.mxu0 0.0
    %413 = vmatpush2.msra.mxu0 0.0
    %414 = vmatprep.subr.mxu0 0.0
    %415 = vmatpush2.msra.mxu0 0.0
    %416 = vmatprep.subr.mxu0 0.0
    %417 = vmatpush2.msra.mxu0 0.0
    %418 = vmatprep.subr.mxu0 0.0
    %419 = vmatpush2.msra.mxu0 0.0
    %420 = vmatprep.subr.mxu0 0.0
    %421 = vmatpush2.msra.mxu0 0.0
    %422 = vmatprep.subr.mxu0 0.0
    %423 = vmatpush2.msra.mxu0 0.0
    %424 = vmatprep.subr.mxu0 0.0
    %425 = vmatpush2.msra.mxu0 0.0
    %426 = vmatprep.subr.mxu0 0.0
    %427 = vmatpush2.msra.mxu0 0.0
    %428 = vmatprep.subr.mxu0 0.0
    %429 = vmatpush2.msra.mxu0 0.0
    %430 = vmatprep.subr.mxu0 0.0
    %431 = vmatpush2.msra.mxu0 0.0
    %432 = vmatprep.mubr.f32.mxu0 0.0
    %433 = vmatmul.mubr.f32.gmra.mxu0 %v363
    %v434 = vpop.f32.mrf.mxu0
    %v435 = vadd.f32 %v354, %v434
    %v436 = vpop.f32.mrf.mxu0
    %v437 = vadd.f32 %v354, %v436
    %438 = vmatprep.mubr.f32.mxu0 0.0
    %439 = vmatmul.mubr.f32.gmra.mxu0 %v366
    %v440 = vpop.f32.mrf.mxu0
    %v441 = vadd.f32 %v359, %v440
    %v442 = vpop.f32.mrf.mxu0
    %v443 = vadd.f32 %v359, %v442
    %444 = vdwg.mxu0
    %445 = vmatprep.subr.mxu0 0.0
    %446 = vmatpush1.msra.mxu0 0.0
    %447 = vmatprep.subr.mxu0 0.0
    %448 = vmatpush1.msra.mxu0 0.0
    %449 = vmatprep.subr.mxu0 0.0
    %450 = vmatpush1.msra.mxu0 0.0
    %451 = vmatprep.subr.mxu0 0.0
    %452 = vmatpush1.msra.mxu0 0.0
    %453 = vmatprep.subr.mxu0 0.0
    %454 = vmatpush1.msra.mxu0 0.0
    %455 = vmatprep.subr.mxu0 0.0
    %456 = vmatpush1.msra.mxu0 0.0
    %457 = vmatprep.subr.mxu0 0.0
    %458 = vmatpush1.msra.mxu0 0.0
    %459 = vmatprep.subr.mxu0 %v350
    %460 = vmatpush1.msra.mxu0 %v349
    %461 = vmatprep.subr.mxu0 %v333
    %462 = vmatpush1.msra.mxu0 %v332
    %463 = vmatprep.subr.mxu0 %v316
    %464 = vmatpush1.msra.mxu0 %v315
    %465 = vmatprep.subr.mxu0 %v299
    %466 = vmatpush1.msra.mxu0 %v298
    %467 = vmatprep.subr.mxu0 %v76
    %468 = vmatpush1.msra.mxu0 %v75
    %469 = vmatprep.subr.mxu0 %v282
    %470 = vmatpush1.msra.mxu0 %v281
    %471 = vmatprep.subr.mxu0 %v265
    %472 = vmatpush1.msra.mxu0 %v264
    %473 = vmatprep.subr.mxu0 %v248
    %474 = vmatpush1.msra.mxu0 %v247
    %475 = vmatprep.subr.mxu0 %v231
    %476 = vmatpush1.msra.mxu0 %v230
    %477 = vmatprep.subr.mxu0 0.0
    %478 = vmatpush2.msra.mxu0 0.0
    %479 = vmatprep.subr.mxu0 0.0
    %480 = vmatpush2.msra.mxu0 0.0
    %481 = vmatprep.subr.mxu0 0.0
    %482 = vmatpush2.msra.mxu0 0.0
    %483 = vmatprep.subr.mxu0 0.0
    %484 = vmatpush2.msra.mxu0 0.0
    %485 = vmatprep.subr.mxu0 0.0
    %486 = vmatpush2.msra.mxu0 0.0
    %487 = vmatprep.subr.mxu0 0.0
    %488 = vmatpush2.msra.mxu0 0.0
    %489 = vmatprep.subr.mxu0 0.0
    %490 = vmatpush2.msra.mxu0 0.0
    %491 = vmatprep.subr.mxu0 0.0
    %492 = vmatpush2.msra.mxu0 0.0
    %493 = vmatprep.subr.mxu0 0.0
    %494 = vmatpush2.msra.mxu0 0.0
    %495 = vmatprep.subr.mxu0 0.0
    %496 = vmatpush2.msra.mxu0 0.0
    %497 = vmatprep.subr.mxu0 0.0
    %498 = vmatpush2.msra.mxu0 0.0
    %499 = vmatprep.subr.mxu0 0.0
    %500 = vmatpush2.msra.mxu0 0.0
    %501 = vmatprep.subr.mxu0 0.0
    %502 = vmatpush2.msra.mxu0 0.0
    %503 = vmatprep.subr.mxu0 0.0
    %504 = vmatpush2.msra.mxu0 0.0
    %505 = vmatprep.subr.mxu0 0.0
    %506 = vmatpush2.msra.mxu0 0.0
    %507 = vmatprep.subr.mxu0 0.0
    %508 = vmatpush2.msra.mxu0 0.0
    %509 = vmatprep.mubr.f32.mxu0 0.0
    %510 = vmatmul.mubr.f32.gmra.mxu0 %v363
    %v511 = vpop.f32.mrf.mxu0
    %v512 = vadd.f32 %v354, %v511
    %v513 = vpop.f32.mrf.mxu0
    %v514 = vadd.f32 %v354, %v513
    %515 = vmatprep.mubr.f32.mxu0 0.0
    %516 = vmatmul.mubr.f32.gmra.mxu0 %v366
    %v517 = vpop.f32.mrf.mxu0
    %v518 = vadd.f32 %v359, %v517
    %v519 = vpop.f32.mrf.mxu0
    %v520 = vadd.f32 %v359, %v519
    %521 = vdwg.mxu0
    %v522 = vadd.f32 %v435, %v437
    %523 = vadd.xlane.f32.xlu0 %v522
    %v524 = vpop.xlane.xlu0 %523
    %v525 = vrot.slane %v524, 4
    %v526 = vadd.f32 %v524, %v525
    %v527 = vrot.slane %v526, 2
    %v528 = vadd.f32 %v526, %v527
    %v529 = vrot.slane %v528, 1
    %v530 = vadd.f32 %v528, %v529
    %s531 = vtos %v530
    %v532 = vrcp.pop 2048.0
    %s533 = vtos %v532
    %s534 = smul.f32 %s531, %s533
    %v535 = vstv %s534
    %v536 = vsub.f32 %v435, %v535
    %v537 = vsub.f32 %v437, %v535
    %v538 = vmul.f32 %v536, %v536
    %v539 = vmul.f32 %v537, %v537
    %v540 = vadd.f32 %v538, %v539
    %541 = vadd.xlane.f32.xlu0 %v540
    %v542 = vpop.xlane.xlu0 %541
    %v543 = vrot.slane %v542, 4
    %v544 = vadd.f32 %v542, %v543
    %v545 = vrot.slane %v544, 2
    %v546 = vadd.f32 %v544, %v545
    %v547 = vrot.slane %v546, 1
    %v548 = vadd.f32 %v546, %v547
    %s549 = vtos %v548
    %v550 = vrcp.pop 2048.0
    %s551 = vtos %v550
    %s552 = smul.f32 %s549, %s551
    %s553 = sadd.f32 %s552, 1e-05
    %v554 = vstv %s553
    %v555 = vrsqrt.pop %v554
    %s556 = vtos %v555
    %v557 = vstv %s556
    %v558 = vmul.f32 %v536, %v557
    %v559 = vmul.f32 %v537, %v557
    %v560 = vadd.f32 %v512, %v514
    %561 = vadd.xlane.f32.xlu0 %v560
    %v562 = vpop.xlane.xlu0 %561
    %v563 = vrot.slane %v562, 4
    %v564 = vadd.f32 %v562, %v563
    %v565 = vrot.slane %v564, 2
    %v566 = vadd.f32 %v564, %v565
    %v567 = vrot.slane %v566, 1
    %v568 = vadd.f32 %v566, %v567
    %s569 = vtos %v568
    %v570 = vrcp.pop 2048.0
    %s571 = vtos %v570
    %s572 = smul.f32 %s569, %s571
    %v573 = vstv %s572
    %v574 = vsub.f32 %v512, %v573
    %v575 = vsub.f32 %v514, %v573
    %v576 = vmul.f32 %v574, %v574
    %v577 = vmul.f32 %v575, %v575
    %v578 = vadd.f32 %v576, %v577
    %579 = vadd.xlane.f32.xlu0 %v578
    %v580 = vpop.xlane.xlu0 %579
    %v581 = vrot.slane %v580, 4
    %v582 = vadd.f32 %v580, %v581
    %v583 = vrot.slane %v582, 2
    %v584 = vadd.f32 %v582, %v583
    %v585 = vrot.slane %v584, 1
    %v586 = vadd.f32 %v584, %v585
    %s587 = vtos %v586
    %v588 = vrcp.pop 2048.0
    %s589 = vtos %v588
    %s590 = smul.f32 %s587, %s589
    %s591 = sadd.f32 %s590, 1e-05
    %v592 = vstv %s591
    %v593 = vrsqrt.pop %v592
    %s594 = vtos %v593
    %v595 = vstv %s594
    %v596 = vmul.f32 %v574, %v595
    %v597 = vmul.f32 %v575, %v595
    %v598 = vadd.f32 %v441, %v443
    %599 = vadd.xlane.f32.xlu0 %v598
    %v600 = vpop.xlane.xlu0 %599
    %v601 = vrot.slane %v600, 4
    %v602 = vadd.f32 %v600, %v601
    %v603 = vrot.slane %v602, 2
    %v604 = vadd.f32 %v602, %v603
    %v605 = vrot.slane %v604, 1
    %v606 = vadd.f32 %v604, %v605
    %s607 = vtos %v606
    %v608 = vrcp.pop 2048.0
    %s609 = vtos %v608
    %s610 = smul.f32 %s607, %s609
    %v611 = vstv %s610
    %v612 = vsub.f32 %v441, %v611
    %v613 = vsub.f32 %v443, %v611
    %v614 = vmul.f32 %v612, %v612
    %v615 = vmul.f32 %v613, %v613
    %v616 = vadd.f32 %v614, %v615
    %617 = vadd.xlane.f32.xlu0 %v616
    %v618 = vpop.xlane.xlu0 %617
    %v619 = vrot.slane %v618, 4
    %v620 = vadd.f32 %v618, %v619
    %v621 = vrot.slane %v620, 2
    %v622 = vadd.f32 %v620, %v621
    %v623 = vrot.slane %v622, 1
    %v624 = vadd.f32 %v622, %v623
    %s625 = vtos %v624
    %v626 = vrcp.pop 2048.0
    %s627 = vtos %v626
    %s628 = smul.f32 %s625, %s627
    %s629 = sadd.f32 %s628, 1e-05
    %v630 = vstv %s629
    %v631 = vrsqrt.pop %v630
    %s632 = vtos %v631
    %v633 = vstv %s632
    %v634 = vmul.f32 %v612, %v633
    %v635 = vmul.f32 %v613, %v633
    %v636 = vadd.f32 %v518, %v520
    %637 = vadd.xlane.f32.xlu0 %v636
    %v638 = vpop.xlane.xlu0 %637
    %v639 = vrot.slane %v638, 4
    %v640 = vadd.f32 %v638, %v639
    %v641 = vrot.slane %v640, 2
    %v642 = vadd.f32 %v640, %v641
    %v643 = vrot.slane %v642, 1
    %v644 = vadd.f32 %v642, %v643
    %s645 = vtos %v644
    %v646 = vrcp.pop 2048.0
    %s647 = vtos %v646
    %s648 = smul.f32 %s645, %s647
    %v649 = vstv %s648
    %v650 = vsub.f32 %v518, %v649
    %v651 = vsub.f32 %v520, %v649
    %v652 = vmul.f32 %v650, %v650
    %v653 = vmul.f32 %v651, %v651
    %v654 = vadd.f32 %v652, %v653
    %655 = vadd.xlane.f32.xlu0 %v654
    %v656 = vpop.xlane.xlu0 %655
    %v657 = vrot.slane %v656, 4
    %v658 = vadd.f32 %v656, %v657
    %v659 = vrot.slane %v658, 2
    %v660 = vadd.f32 %v658, %v659
    %v661 = vrot.slane %v660, 1
    %v662 = vadd.f32 %v660, %v661
    %s663 = vtos %v662
    %v664 = vrcp.pop 2048.0
    %s665 = vtos %v664
    %s666 = smul.f32 %s663, %s665
    %s667 = sadd.f32 %s666, 1e-05
    %v668 = vstv %s667
    %v669 = vrsqrt.pop %v668
    %s670 = vtos %v669
    %v671 = vstv %s670
    %v672 = vmul.f32 %v650, %v671
    %v673 = vmul.f32 %v651, %v671
    %674 = vset.pattern.permute.xlu0 1
    %675 = vperm.xlu0 %674, %v77
    %v676 = vpop.permute.xlu0 %675
    %678 = vset.pattern.permute.xlu0 1
    %679 = vperm.xlu0 %678, %v78
    %v680 = vpop.permute.xlu0 %679
    %v682 = vmul.f32 %v558, %v676
    %v683 = vmul.f32 %v559, %v676
    %v684 = vmul.f32 %v596, %v676
    %v685 = vmul.f32 %v597, %v676
    %v686 = vmul.f32 %v634, %v680
    %v687 = vmul.f32 %v635, %v680
    %v688 = vmul.f32 %v672, %v680
    %v689 = vmul.f32 %v673, %v680
    %690 = vset.pattern.permute.xlu0 2
    %691 = vperm.xlu0 %690, %v77
    %v692 = vpop.permute.xlu0 %691
    %694 = vset.pattern.permute.xlu0 2
    %695 = vperm.xlu0 %694, %v78
    %v696 = vpop.permute.xlu0 %695
    %v698 = vadd.f32 %v682, %v692
    %v699 = vadd.f32 %v683, %v692
    %v700 = vadd.f32 %v684, %v692
    %v701 = vadd.f32 %v685, %v692
    %v702 = vadd.f32 %v686, %v696
    %v703 = vadd.f32 %v687, %v696
    %v704 = vadd.f32 %v688, %v696
    %v705 = vadd.f32 %v689, %v696
    %v706 = vmax.f32 %v698, 0.0
    %v707 = vmax.f32 %v699, 0.0
    %v708 = vmax.f32 %v700, 0.0
    %v709 = vmax.f32 %v701, 0.0
    %v710 = vmax.f32 %v702, 0.0
    %v711 = vmax.f32 %v703, 0.0
    %v712 = vmax.f32 %v704, 0.0
    %v713 = vmax.f32 %v705, 0.0
    %v714 = vld [vmem:[#allocation7] sm:$0xff]
    %v715 = vld [vmem:[#allocation7 + $0x8] sm:$0xff]
    %v716 = vld [vmem:[#allocation7 + $0x10] sm:$0xff]
    %v717 = vld [vmem:[#allocation7 + $0x18] sm:$0xff]
    %718 = vrot.lane.b32.xlu0 %v706, 17
    %v719 = vpop.permute.xlu0 %718
    %720 = vrot.lane.b32.xlu0 %v710, 17
    %v721 = vpop.permute.xlu0 %720
    %722 = vrot.lane.b32.xlu0 %v707, 17
    %v723 = vpop.permute.xlu0 %722
    %724 = vrot.lane.b32.xlu0 %v711, 17
    %v725 = vpop.permute.xlu0 %724
    %726 = vrot.lane.b32.xlu0 %v708, 17
    %v727 = vpop.permute.xlu0 %726
    %728 = vrot.lane.b32.xlu0 %v712, 17
    %v729 = vpop.permute.xlu0 %728
    %730 = vrot.lane.b32.xlu0 %v709, 17
    %v731 = vpop.permute.xlu0 %730
    %732 = vrot.lane.b32.xlu0 %v713, 17
    %v733 = vpop.permute.xlu0 %732
    %v734 = vsel %vm223, %v727, %v731
    %v735 = vsel %vm223, %v729, %v733
    %v736 = vsel %vm223, %v723, %v727
    %v737 = vsel %vm223, %v725, %v729
    %v738 = vsel %vm223, %v719, %v723
    %v739 = vsel %vm223, %v721, %v725
    %v740 = vsel %vm223, %v731, %v719
    %v741 = vsel %vm223, %v733, %v721
    %v742 = vmul.f32 %v740, %v86
    %v743 = vmul.f32 %v738, %v90
    %v744 = vmul.f32 %v736, %v94
    %v745 = vmul.f32 %v734, %v98
    %v746 = vmul.f32 %v741, %v86
    %v747 = vmul.f32 %v739, %v90
    %v748 = vmul.f32 %v737, %v94
    %v749 = vmul.f32 %v735, %v98
    %750 = vrot.lane.b32.xlu0 %v706, 16
    %v751 = vpop.permute.xlu0 %750
    %752 = vrot.lane.b32.xlu0 %v710, 16
    %v753 = vpop.permute.xlu0 %752
    %754 = vrot.lane.b32.xlu0 %v707, 16
    %v755 = vpop.permute.xlu0 %754
    %756 = vrot.lane.b32.xlu0 %v711, 16
    %v757 = vpop.permute.xlu0 %756
    %758 = vrot.lane.b32.xlu0 %v708, 16
    %v759 = vpop.permute.xlu0 %758
    %760 = vrot.lane.b32.xlu0 %v712, 16
    %v761 = vpop.permute.xlu0 %760
    %762 = vrot.lane.b32.xlu0 %v709, 16
    %v763 = vpop.permute.xlu0 %762
    %764 = vrot.lane.b32.xlu0 %v713, 16
    %v765 = vpop.permute.xlu0 %764
    %v766 = vsel %vm240, %v759, %v763
    %v767 = vsel %vm240, %v761, %v765
    %v768 = vsel %vm240, %v755, %v759
    %v769 = vsel %vm240, %v757, %v761
    %v770 = vsel %vm240, %v751, %v755
    %v771 = vsel %vm240, %v753, %v757
    %v772 = vsel %vm240, %v763, %v751
    %v773 = vsel %vm240, %v765, %v753
    %v774 = vmul.f32 %v772, %v102
    %v775 = vmul.f32 %v770, %v106
    %v776 = vmul.f32 %v768, %v110
    %v777 = vmul.f32 %v766, %v114
    %v778 = vmul.f32 %v773, %v102
    %v779 = vmul.f32 %v771, %v106
    %v780 = vmul.f32 %v769, %v110
    %v781 = vmul.f32 %v767, %v114
    %782 = vrot.lane.b32.xlu0 %v706, 15
    %v783 = vpop.permute.xlu0 %782
    %784 = vrot.lane.b32.xlu0 %v710, 15
    %v785 = vpop.permute.xlu0 %784
    %786 = vrot.lane.b32.xlu0 %v707, 15
    %v787 = vpop.permute.xlu0 %786
    %788 = vrot.lane.b32.xlu0 %v711, 15
    %v789 = vpop.permute.xlu0 %788
    %790 = vrot.lane.b32.xlu0 %v708, 15
    %v791 = vpop.permute.xlu0 %790
    %792 = vrot.lane.b32.xlu0 %v712, 15
    %v793 = vpop.permute.xlu0 %792
    %794 = vrot.lane.b32.xlu0 %v709, 15
    %v795 = vpop.permute.xlu0 %794
    %796 = vrot.lane.b32.xlu0 %v713, 15
    %v797 = vpop.permute.xlu0 %796
    %v798 = vsel %vm257, %v791, %v795
    %v799 = vsel %vm257, %v793, %v797
    %v800 = vsel %vm257, %v787, %v791
    %v801 = vsel %vm257, %v789, %v793
    %v802 = vsel %vm257, %v783, %v787
    %v803 = vsel %vm257, %v785, %v789
    %v804 = vsel %vm257, %v795, %v783
    %v805 = vsel %vm257, %v797, %v785
    %v806 = vmul.f32 %v804, %v118
    %v807 = vmul.f32 %v802, %v122
    %v808 = vmul.f32 %v800, %v126
    %v809 = vmul.f32 %v798, %v130
    %v810 = vmul.f32 %v805, %v118
    %v811 = vmul.f32 %v803, %v122
    %v812 = vmul.f32 %v801, %v126
    %v813 = vmul.f32 %v799, %v130
    %814 = vrot.lane.b32.xlu0 %v706, 1
    %v815 = vpop.permute.xlu0 %814
    %816 = vrot.lane.b32.xlu0 %v710, 1
    %v817 = vpop.permute.xlu0 %816
    %818 = vrot.lane.b32.xlu0 %v707, 1
    %v819 = vpop.permute.xlu0 %818
    %820 = vrot.lane.b32.xlu0 %v711, 1
    %v821 = vpop.permute.xlu0 %820
    %822 = vrot.lane.b32.xlu0 %v708, 1
    %v823 = vpop.permute.xlu0 %822
    %824 = vrot.lane.b32.xlu0 %v712, 1
    %v825 = vpop.permute.xlu0 %824
    %826 = vrot.lane.b32.xlu0 %v709, 1
    %v827 = vpop.permute.xlu0 %826
    %828 = vrot.lane.b32.xlu0 %v713, 1
    %v829 = vpop.permute.xlu0 %828
    %v830 = vsel %vm274, %v823, %v827
    %v831 = vsel %vm274, %v825, %v829
    %v832 = vsel %vm274, %v819, %v823
    %v833 = vsel %vm274, %v821, %v825
    %v834 = vsel %vm274, %v815, %v819
    %v835 = vsel %vm274, %v817, %v821
    %v836 = vsel %vm274, %v827, %v815
    %v837 = vsel %vm274, %v829, %v817
    %v838 = vmul.f32 %v836, %v134
    %v839 = vmul.f32 %v834, %v138
    %v840 = vmul.f32 %v832, %v142
    %v841 = vmul.f32 %v830, %v146
    %v842 = vmul.f32 %v837, %v134
    %v843 = vmul.f32 %v835, %v138
    %v844 = vmul.f32 %v833, %v142
    %v845 = vmul.f32 %v831, %v146
    %846 = vrot.lane.b32.xlu0 %v706, 127
    %v847 = vpop.permute.xlu0 %846
    %848 = vrot.lane.b32.xlu0 %v710, 127
    %v849 = vpop.permute.xlu0 %848
    %850 = vrot.lane.b32.xlu0 %v707, 127
    %v851 = vpop.permute.xlu0 %850
    %852 = vrot.lane.b32.xlu0 %v711, 127
    %v853 = vpop.permute.xlu0 %852
    %854 = vrot.lane.b32.xlu0 %v708, 127
    %v855 = vpop.permute.xlu0 %854
    %856 = vrot.lane.b32.xlu0 %v712, 127
    %v857 = vpop.permute.xlu0 %856
    %858 = vrot.lane.b32.xlu0 %v709, 127
    %v859 = vpop.permute.xlu0 %858
    %860 = vrot.lane.b32.xlu0 %v713, 127
    %v861 = vpop.permute.xlu0 %860
    %v862 = vsel %vm291, %v855, %v859
    %v863 = vsel %vm291, %v857, %v861
    %v864 = vsel %vm291, %v851, %v855
    %v865 = vsel %vm291, %v853, %v857
    %v866 = vsel %vm291, %v847, %v851
    %v867 = vsel %vm291, %v849, %v853
    %v868 = vsel %vm291, %v859, %v847
    %v869 = vsel %vm291, %v861, %v849
    %v870 = vmul.f32 %v866, %v150
    %v871 = vmul.f32 %v864, %v154
    %v872 = vmul.f32 %v862, %v158
    %v873 = vmul.f32 %v868, %v162
    %v874 = vmul.f32 %v867, %v150
    %v875 = vmul.f32 %v865, %v154
    %v876 = vmul.f32 %v863, %v158
    %v877 = vmul.f32 %v869, %v162
    %878 = vrot.lane.b32.xlu0 %v706, 113
    %v879 = vpop.permute.xlu0 %878
    %880 = vrot.lane.b32.xlu0 %v710, 113
    %v881 = vpop.permute.xlu0 %880
    %882 = vrot.lane.b32.xlu0 %v707, 113
    %v883 = vpop.permute.xlu0 %882
    %884 = vrot.lane.b32.xlu0 %v711, 113
    %v885 = vpop.permute.xlu0 %884
    %886 = vrot.lane.b32.xlu0 %v708, 113
    %v887 = vpop.permute.xlu0 %886
    %888 = vrot.lane.b32.xlu0 %v712, 113
    %v889 = vpop.permute.xlu0 %888
    %890 = vrot.lane.b32.xlu0 %v709, 113
    %v891 = vpop.permute.xlu0 %890
    %892 = vrot.lane.b32.xlu0 %v713, 113
    %v893 = vpop.permute.xlu0 %892
    %v894 = vsel %vm308, %v887, %v891
    %v895 = vsel %vm308, %v889, %v893
    %v896 = vsel %vm308, %v883, %v887
    %v897 = vsel %vm308, %v885, %v889
    %v898 = vsel %vm308, %v879, %v883
    %v899 = vsel %vm308, %v881, %v885
    %v900 = vsel %vm308, %v891, %v879
    %v901 = vsel %vm308, %v893, %v881
    %v902 = vmul.f32 %v898, %v166
    %v903 = vmul.f32 %v896, %v170
    %v904 = vmul.f32 %v894, %v174
    %v905 = vmul.f32 %v900, %v178
    %v906 = vmul.f32 %v899, %v166
    %v907 = vmul.f32 %v897, %v170
    %v908 = vmul.f32 %v895, %v174
    %v909 = vmul.f32 %v901, %v178
    %910 = vrot.lane.b32.xlu0 %v706, 112
    %v911 = vpop.permute.xlu0 %910
    %912 = vrot.lane.b32.xlu0 %v710, 112
    %v913 = vpop.permute.xlu0 %912
    %914 = vrot.lane.b32.xlu0 %v707, 112
    %v915 = vpop.permute.xlu0 %914
    %916 = vrot.lane.b32.xlu0 %v711, 112
    %v917 = vpop.permute.xlu0 %916
    %918 = vrot.lane.b32.xlu0 %v708, 112
    %v919 = vpop.permute.xlu0 %918
    %920 = vrot.lane.b32.xlu0 %v712, 112
    %v921 = vpop.permute.xlu0 %920
    %922 = vrot.lane.b32.xlu0 %v709, 112
    %v923 = vpop.permute.xlu0 %922
    %924 = vrot.lane.b32.xlu0 %v713, 112
    %v925 = vpop.permute.xlu0 %924
    %v926 = vsel %vm325, %v919, %v923
    %v927 = vsel %vm325, %v921, %v925
    %v928 = vsel %vm325, %v915, %v919
    %v929 = vsel %vm325, %v917, %v921
    %v930 = vsel %vm325, %v911, %v915
    %v931 = vsel %vm325, %v913, %v917
    %v932 = vsel %vm325, %v923, %v911
    %v933 = vsel %vm325, %v925, %v913
    %v934 = vmul.f32 %v930, %v182
    %v935 = vmul.f32 %v928, %v186
    %v936 = vmul.f32 %v926, %v190
    %v937 = vmul.f32 %v932, %v194
    %v938 = vmul.f32 %v931, %v182
    %v939 = vmul.f32 %v929, %v186
    %v940 = vmul.f32 %v927, %v190
    %v941 = vmul.f32 %v933, %v194
    %942 = vrot.lane.b32.xlu0 %v706, 111
    %v943 = vpop.permute.xlu0 %942
    %944 = vrot.lane.b32.xlu0 %v710, 111
    %v945 = vpop.permute.xlu0 %944
    %946 = vrot.lane.b32.xlu0 %v707, 111
    %v947 = vpop.permute.xlu0 %946
    %948 = vrot.lane.b32.xlu0 %v711, 111
    %v949 = vpop.permute.xlu0 %948
    %950 = vrot.lane.b32.xlu0 %v708, 111
    %v951 = vpop.permute.xlu0 %950
    %952 = vrot.lane.b32.xlu0 %v712, 111
    %v953 = vpop.permute.xlu0 %952
    %954 = vrot.lane.b32.xlu0 %v709, 111
    %v955 = vpop.permute.xlu0 %954
    %956 = vrot.lane.b32.xlu0 %v713, 111
    %v957 = vpop.permute.xlu0 %956
    %v958 = vsel %vm342, %v951, %v955
    %v959 = vsel %vm342, %v953, %v957
    %v960 = vsel %vm342, %v947, %v951
    %v961 = vsel %vm342, %v949, %v953
    %v962 = vsel %vm342, %v943, %v947
    %v963 = vsel %vm342, %v945, %v949
    %v964 = vsel %vm342, %v955, %v943
    %v965 = vsel %vm342, %v957, %v945
    %v966 = vmul.f32 %v962, %v198
    %v967 = vmul.f32 %v960, %v202
    %v968 = vmul.f32 %v958, %v206
    %v969 = vmul.f32 %v964, %v210
    %v970 = vmul.f32 %v963, %v198
    %v971 = vmul.f32 %v961, %v202
    %v972 = vmul.f32 %v959, %v206
    %v973 = vmul.f32 %v965, %v210
    %974 = vset.pattern.permute.xlu0 3
    %975 = vperm.xlu0 %974, %v77
    %v976 = vpop.permute.xlu0 %975
    %978 = vset.pattern.permute.xlu0 3
    %979 = vperm.xlu0 %978, %v78
    %v980 = vpop.permute.xlu0 %979
    %vm982 = vcmask 130048
    %v984 = vsel %vm982, %v715, 0
    %v987 = vsel %vm982, %v717, 0
    %989 = vmatprep.subr.mxu0 %v939
    %990 = vmatpush1.msra.mxu0 %v938
    %991 = vmatprep.subr.mxu0 %v935
    %992 = vmatpush1.msra.mxu0 %v934
    %993 = vmatprep.subr.mxu0 %v907
    %994 = vmatpush1.msra.mxu0 %v906
    %995 = vmatprep.subr.mxu0 %v903
    %996 = vmatpush1.msra.mxu0 %v902
    %997 = vmatprep.subr.mxu0 %v875
    %998 = vmatpush1.msra.mxu0 %v874
    %999 = vmatprep.subr.mxu0 %v871
    %1000 = vmatpush1.msra.mxu0 %v870
    %1001 = vmatprep.subr.mxu0 %v711
    %1002 = vmatpush1.msra.mxu0 %v710
    %1003 = vmatprep.subr.mxu0 %v707
    %1004 = vmatpush1.msra.mxu0 %v706
    %1005 = vmatprep.subr.mxu0 %v843
    %1006 = vmatpush1.msra.mxu0 %v842
    %1007 = vmatprep.subr.mxu0 %v839
    %1008 = vmatpush1.msra.mxu0 %v838
    %1009 = vmatprep.subr.mxu0 %v811
    %1010 = vmatpush1.msra.mxu0 %v810
    %1011 = vmatprep.subr.mxu0 %v807
    %1012 = vmatpush1.msra.mxu0 %v806
    %1013 = vmatprep.subr.mxu0 %v779
    %1014 = vmatpush1.msra.mxu0 %v778
    %1015 = vmatprep.subr.mxu0 %v775
    %1016 = vmatpush1.msra.mxu0 %v774
    %1017 = vmatprep.subr.mxu0 %v747
    %1018 = vmatpush1.msra.mxu0 %v746
    %1019 = vmatprep.subr.mxu0 %v743
    %1020 = vmatpush1.msra.mxu0 %v742
    %1021 = vmatprep.subr.mxu0 0.0
    %1022 = vmatpush2.msra.mxu0 0.0
    %1023 = vmatprep.subr.mxu0 0.0
    %1024 = vmatpush2.msra.mxu0 0.0
    %1025 = vmatprep.subr.mxu0 0.0
    %1026 = vmatpush2.msra.mxu0 0.0
    %1027 = vmatprep.subr.mxu0 0.0
    %1028 = vmatpush2.msra.mxu0 0.0
    %1029 = vmatprep.subr.mxu0 0.0
    %1030 = vmatpush2.msra.mxu0 0.0
    %1031 = vmatprep.subr.mxu0 0.0
    %1032 = vmatpush2.msra.mxu0 0.0
    %1033 = vmatprep.subr.mxu0 0.0
    %1034 = vmatpush2.msra.mxu0 0.0
    %1035 = vmatprep.subr.mxu0 0.0
    %1036 = vmatpush2.msra.mxu0 0.0
    %1037 = vmatprep.subr.mxu0 0.0
    %1038 = vmatpush2.msra.mxu0 0.0
    %1039 = vmatprep.subr.mxu0 0.0
    %1040 = vmatpush2.msra.mxu0 0.0
    %1041 = vmatprep.subr.mxu0 0.0
    %1042 = vmatpush2.msra.mxu0 0.0
    %1043 = vmatprep.subr.mxu0 0.0
    %1044 = vmatpush2.msra.mxu0 0.0
    %1045 = vmatprep.subr.mxu0 0.0
    %1046 = vmatpush2.msra.mxu0 0.0
    %1047 = vmatprep.subr.mxu0 0.0
    %1048 = vmatpush2.msra.mxu0 0.0
    %1049 = vmatprep.subr.mxu0 %v971
    %1050 = vmatpush2.msra.mxu0 %v970
    %1051 = vmatprep.subr.mxu0 %v967
    %1052 = vmatpush2.msra.mxu0 %v966
    %1053 = vmatprep.mubr.f32.mxu0 %v984
    %1054 = vmatmul.mubr.f32.gmra.mxu0 %v714
    %v1055 = vpop.f32.mrf.mxu0
    %v1056 = vadd.f32 %v976, %v1055
    %v1057 = vpop.f32.mrf.mxu0
    %v1058 = vadd.f32 %v976, %v1057
    %1059 = vmatprep.mubr.f32.mxu0 %v987
    %1060 = vmatmul.mubr.f32.gmra.mxu0 %v716
    %v1061 = vpop.f32.mrf.mxu0
    %v1062 = vadd.f32 %v980, %v1061
    %v1063 = vpop.f32.mrf.mxu0
    %v1064 = vadd.f32 %v980, %v1063
    %1065 = vdwg.mxu0
    %1066 = vmatprep.subr.mxu0 %v941
    %1067 = vmatpush1.msra.mxu0 %v940
    %1068 = vmatprep.subr.mxu0 %v937
    %1069 = vmatpush1.msra.mxu0 %v936
    %1070 = vmatprep.subr.mxu0 %v909
    %1071 = vmatpush1.msra.mxu0 %v908
    %1072 = vmatprep.subr.mxu0 %v905
    %1073 = vmatpush1.msra.mxu0 %v904
    %1074 = vmatprep.subr.mxu0 %v877
    %1075 = vmatpush1.msra.mxu0 %v876
    %1076 = vmatprep.subr.mxu0 %v873
    %1077 = vmatpush1.msra.mxu0 %v872
    %1078 = vmatprep.subr.mxu0 %v713
    %1079 = vmatpush1.msra.mxu0 %v712
    %1080 = vmatprep.subr.mxu0 %v709
    %1081 = vmatpush1.msra.mxu0 %v708
    %1082 = vmatprep.subr.mxu0 %v845
    %1083 = vmatpush1.msra.mxu0 %v844
    %1084 = vmatprep.subr.mxu0 %v841
    %1085 = vmatpush1.msra.mxu0 %v840
    %1086 = vmatprep.subr.mxu0 %v813
    %1087 = vmatpush1.msra.mxu0 %v812
    %1088 = vmatprep.subr.mxu0 %v809
    %1089 = vmatpush1.msra.mxu0 %v808
    %1090 = vmatprep.subr.mxu0 %v781
    %1091 = vmatpush1.msra.mxu0 %v780
    %1092 = vmatprep.subr.mxu0 %v777
    %1093 = vmatpush1.msra.mxu0 %v776
    %1094 = vmatprep.subr.mxu0 %v749
    %1095 = vmatpush1.msra.mxu0 %v748
    %1096 = vmatprep.subr.mxu0 %v745
    %1097 = vmatpush1.msra.mxu0 %v744
    %1098 = vmatprep.subr.mxu0 0.0
    %1099 = vmatpush2.msra.mxu0 0.0
    %1100 = vmatprep.subr.mxu0 0.0
    %1101 = vmatpush2.msra.mxu0 0.0
    %1102 = vmatprep.subr.mxu0 0.0
    %1103 = vmatpush2.msra.mxu0 0.0
    %1104 = vmatprep.subr.mxu0 0.0
    %1105 = vmatpush2.msra.mxu0 0.0
    %1106 = vmatprep.subr.mxu0 0.0
    %1107 = vmatpush2.msra.mxu0 0.0
    %1108 = vmatprep.subr.mxu0 0.0
    %1109 = vmatpush2.msra.mxu0 0.0
    %1110 = vmatprep.subr.mxu0 0.0
    %1111 = vmatpush2.msra.mxu0 0.0
    %1112 = vmatprep.subr.mxu0 0.0
    %1113 = vmatpush2.msra.mxu0 0.0
    %1114 = vmatprep.subr.mxu0 0.0
    %1115 = vmatpush2.msra.mxu0 0.0
    %1116 = vmatprep.subr.mxu0 0.0
    %1117 = vmatpush2.msra.mxu0 0.0
    %1118 = vmatprep.subr.mxu0 0.0
    %1119 = vmatpush2.msra.mxu0 0.0
    %1120 = vmatprep.subr.mxu0 0.0
    %1121 = vmatpush2.msra.mxu0 0.0
    %1122 = vmatprep.subr.mxu0 0.0
    %1123 = vmatpush2.msra.mxu0 0.0
    %1124 = vmatprep.subr.mxu0 0.0
    %1125 = vmatpush2.msra.mxu0 0.0
    %1126 = vmatprep.subr.mxu0 %v973
    %1127 = vmatpush2.msra.mxu0 %v972
    %1128 = vmatprep.subr.mxu0 %v969
    %1129 = vmatpush2.msra.mxu0 %v968
    %1130 = vmatprep.mubr.f32.mxu0 %v984
    %1131 = vmatmul.mubr.f32.gmra.mxu0 %v714
    %v1132 = vpop.f32.mrf.mxu0
    %v1133 = vadd.f32 %v976, %v1132
    %v1134 = vpop.f32.mrf.mxu0
    %v1135 = vadd.f32 %v976, %v1134
    %1136 = vmatprep.mubr.f32.mxu0 %v987
    %1137 = vmatmul.mubr.f32.gmra.mxu0 %v716
    %v1138 = vpop.f32.mrf.mxu0
    %v1139 = vadd.f32 %v980, %v1138
    %v1140 = vpop.f32.mrf.mxu0
    %v1141 = vadd.f32 %v980, %v1140
    %1142 = vdwg.mxu0
    %v1143 = vadd.f32 %v1056, %v1058
    %1144 = vadd.xlane.f32.xlu0 %v1143
    %v1145 = vpop.xlane.xlu0 %1144
    %v1146 = vrot.slane %v1145, 4
    %v1147 = vadd.f32 %v1145, %v1146
    %v1148 = vrot.slane %v1147, 2
    %v1149 = vadd.f32 %v1147, %v1148
    %v1150 = vrot.slane %v1149, 1
    %v1151 = vadd.f32 %v1149, %v1150
    %s1152 = vtos %v1151
    %v1153 = vrcp.pop 2048.0
    %s1154 = vtos %v1153
    %s1155 = smul.f32 %s1152, %s1154
    %v1156 = vstv %s1155
    %v1157 = vsub.f32 %v1056, %v1156
    %v1158 = vsub.f32 %v1058, %v1156
    %v1159 = vmul.f32 %v1157, %v1157
    %v1160 = vmul.f32 %v1158, %v1158
    %v1161 = vadd.f32 %v1159, %v1160
    %1162 = vadd.xlane.f32.xlu0 %v1161
    %v1163 = vpop.xlane.xlu0 %1162
    %v1164 = vrot.slane %v1163, 4
    %v1165 = vadd.f32 %v1163, %v1164
    %v1166 = vrot.slane %v1165, 2
    %v1167 = vadd.f32 %v1165, %v1166
    %v1168 = vrot.slane %v1167, 1
    %v1169 = vadd.f32 %v1167, %v1168
    %s1170 = vtos %v1169
    %v1171 = vrcp.pop 2048.0
    %s1172 = vtos %v1171
    %s1173 = smul.f32 %s1170, %s1172
    %s1174 = sadd.f32 %s1173, 1e-05
    %v1175 = vstv %s1174
    %v1176 = vrsqrt.pop %v1175
    %s1177 = vtos %v1176
    %v1178 = vstv %s1177
    %v1179 = vmul.f32 %v1157, %v1178
    %v1180 = vmul.f32 %v1158, %v1178
    %v1181 = vadd.f32 %v1133, %v1135
    %1182 = vadd.xlane.f32.xlu0 %v1181
    %v1183 = vpop.xlane.xlu0 %1182
    %v1184 = vrot.slane %v1183, 4
    %v1185 = vadd.f32 %v1183, %v1184
    %v1186 = vrot.slane %v1185, 2
    %v1187 = vadd.f32 %v1185, %v1186
    %v1188 = vrot.slane %v1187, 1
    %v1189 = vadd.f32 %v1187, %v1188
    %s1190 = vtos %v1189
    %v1191 = vrcp.pop 2048.0
    %s1192 = vtos %v1191
    %s1193 = smul.f32 %s1190, %s1192
    %v1194 = vstv %s1193
    %v1195 = vsub.f32 %v1133, %v1194
    %v1196 = vsub.f32 %v1135, %v1194
    %v1197 = vmul.f32 %v1195, %v1195
    %v1198 = vmul.f32 %v1196, %v1196
    %v1199 = vadd.f32 %v1197, %v1198
    %1200 = vadd.xlane.f32.xlu0 %v1199
    %v1201 = vpop.xlane.xlu0 %1200
    %v1202 = vrot.slane %v1201, 4
    %v1203 = vadd.f32 %v1201, %v1202
    %v1204 = vrot.slane %v1203, 2
    %v1205 = vadd.f32 %v1203, %v1204
    %v1206 = vrot.slane %v1205, 1
    %v1207 = vadd.f32 %v1205, %v1206
    %s1208 = vtos %v1207
    %v1209 = vrcp.pop 2048.0
    %s1210 = vtos %v1209
    %s1211 = smul.f32 %s1208, %s1210
    %s1212 = sadd.f32 %s1211, 1e-05
    %v1213 = vstv %s1212
    %v1214 = vrsqrt.pop %v1213
    %s1215 = vtos %v1214
    %v1216 = vstv %s1215
    %v1217 = vmul.f32 %v1195, %v1216
    %v1218 = vmul.f32 %v1196, %v1216
    %v1219 = vadd.f32 %v1062, %v1064
    %1220 = vadd.xlane.f32.xlu0 %v1219
    %v1221 = vpop.xlane.xlu0 %1220
    %v1222 = vrot.slane %v1221, 4
    %v1223 = vadd.f32 %v1221, %v1222
    %v1224 = vrot.slane %v1223, 2
    %v1225 = vadd.f32 %v1223, %v1224
    %v1226 = vrot.slane %v1225, 1
    %v1227 = vadd.f32 %v1225, %v1226
    %s1228 = vtos %v1227
    %v1229 = vrcp.pop 2048.0
    %s1230 = vtos %v1229
    %s1231 = smul.f32 %s1228, %s1230
    %v1232 = vstv %s1231
    %v1233 = vsub.f32 %v1062, %v1232
    %v1234 = vsub.f32 %v1064, %v1232
    %v1235 = vmul.f32 %v1233, %v1233
    %v1236 = vmul.f32 %v1234, %v1234
    %v1237 = vadd.f32 %v1235, %v1236
    %1238 = vadd.xlane.f32.xlu0 %v1237
    %v1239 = vpop.xlane.xlu0 %1238
    %v1240 = vrot.slane %v1239, 4
    %v1241 = vadd.f32 %v1239, %v1240
    %v1242 = vrot.slane %v1241, 2
    %v1243 = vadd.f32 %v1241, %v1242
    %v1244 = vrot.slane %v1243, 1
    %v1245 = vadd.f32 %v1243, %v1244
    %s1246 = vtos %v1245
    %v1247 = vrcp.pop 2048.0
    %s1248 = vtos %v1247
    %s1249 = smul.f32 %s1246, %s1248
    %s1250 = sadd.f32 %s1249, 1e-05
    %v1251 = vstv %s1250
    %v1252 = vrsqrt.pop %v1251
    %s1253 = vtos %v1252
    %v1254 = vstv %s1253
    %v1255 = vmul.f32 %v1233, %v1254
    %v1256 = vmul.f32 %v1234, %v1254
    %v1257 = vadd.f32 %v1139, %v1141
    %1258 = vadd.xlane.f32.xlu0 %v1257
    %v1259 = vpop.xlane.xlu0 %1258
    %v1260 = vrot.slane %v1259, 4
    %v1261 = vadd.f32 %v1259, %v1260
    %v1262 = vrot.slane %v1261, 2
    %v1263 = vadd.f32 %v1261, %v1262
    %v1264 = vrot.slane %v1263, 1
    %v1265 = vadd.f32 %v1263, %v1264
    %s1266 = vtos %v1265
    %v1267 = vrcp.pop 2048.0
    %s1268 = vtos %v1267
    %s1269 = smul.f32 %s1266, %s1268
    %v1270 = vstv %s1269
    %v1271 = vsub.f32 %v1139, %v1270
    %v1272 = vsub.f32 %v1141, %v1270
    %v1273 = vmul.f32 %v1271, %v1271
    %v1274 = vmul.f32 %v1272, %v1272
    %v1275 = vadd.f32 %v1273, %v1274
    %1276 = vadd.xlane.f32.xlu0 %v1275
    %v1277 = vpop.xlane.xlu0 %1276
    %v1278 = vrot.slane %v1277, 4
    %v1279 = vadd.f32 %v1277, %v1278
    %v1280 = vrot.slane %v1279, 2
    %v1281 = vadd.f32 %v1279, %v1280
    %v1282 = vrot.slane %v1281, 1
    %v1283 = vadd.f32 %v1281, %v1282
    %s1284 = vtos %v1283
    %v1285 = vrcp.pop 2048.0
    %s1286 = vtos %v1285
    %s1287 = smul.f32 %s1284, %s1286
    %s1288 = sadd.f32 %s1287, 1e-05
    %v1289 = vstv %s1288
    %v1290 = vrsqrt.pop %v1289
    %s1291 = vtos %v1290
    %v1292 = vstv %s1291
    %v1293 = vmul.f32 %v1271, %v1292
    %v1294 = vmul.f32 %v1272, %v1292
    %1295 = vset.pattern.permute.xlu0 4
    %1296 = vperm.xlu0 %1295, %v77
    %v1297 = vpop.permute.xlu0 %1296
    %1299 = vset.pattern.permute.xlu0 4
    %1300 = vperm.xlu0 %1299, %v78
    %v1301 = vpop.permute.xlu0 %1300
    %v1303 = vmul.f32 %v1179, %v1297
    %v1304 = vmul.f32 %v1180, %v1297
    %v1305 = vmul.f32 %v1217, %v1297
    %v1306 = vmul.f32 %v1218, %v1297
    %v1307 = vmul.f32 %v1255, %v1301
    %v1308 = vmul.f32 %v1256, %v1301
    %v1309 = vmul.f32 %v1293, %v1301
    %v1310 = vmul.f32 %v1294, %v1301
    %1311 = vset.pattern.permute.xlu0 5
    %1312 = vperm.xlu0 %1311, %v77
    %v1313 = vpop.permute.xlu0 %1312
    %1315 = vset.pattern.permute.xlu0 5
    %1316 = vperm.xlu0 %1315, %v78
    %v1317 = vpop.permute.xlu0 %1316
    %v1319 = vadd.f32 %v1303, %v1313
    %v1320 = vadd.f32 %v1304, %v1313
    %v1321 = vadd.f32 %v1305, %v1313
    %v1322 = vadd.f32 %v1306, %v1313
    %v1323 = vadd.f32 %v1307, %v1317
    %v1324 = vadd.f32 %v1308, %v1317
    %v1325 = vadd.f32 %v1309, %v1317
    %v1326 = vadd.f32 %v1310, %v1317
    %v1327 = vmax.f32 %v1319, 0.0
    %v1328 = vmax.f32 %v1320, 0.0
    %v1329 = vmax.f32 %v1321, 0.0
    %v1330 = vmax.f32 %v1322, 0.0
    %v1331 = vmax.f32 %v1323, 0.0
    %v1332 = vmax.f32 %v1324, 0.0
    %v1333 = vmax.f32 %v1325, 0.0
    %v1334 = vmax.f32 %v1326, 0.0
    %v1335 = vld [vmem:[#allocation8] sm:$0xff]
    %v1336 = vld [vmem:[#allocation8 + $0x8] sm:$0xff]
    %1337 = vrot.lane.b32.xlu0 %v1327, 17
    %v1338 = vpop.permute.xlu0 %1337
    %1339 = vrot.lane.b32.xlu0 %v1331, 17
    %v1340 = vpop.permute.xlu0 %1339
    %1341 = vrot.lane.b32.xlu0 %v1328, 17
    %v1342 = vpop.permute.xlu0 %1341
    %1343 = vrot.lane.b32.xlu0 %v1332, 17
    %v1344 = vpop.permute.xlu0 %1343
    %1345 = vrot.lane.b32.xlu0 %v1329, 17
    %v1346 = vpop.permute.xlu0 %1345
    %1347 = vrot.lane.b32.xlu0 %v1333, 17
    %v1348 = vpop.permute.xlu0 %1347
    %1349 = vrot.lane.b32.xlu0 %v1330, 17
    %v1350 = vpop.permute.xlu0 %1349
    %1351 = vrot.lane.b32.xlu0 %v1334, 17
    %v1352 = vpop.permute.xlu0 %1351
    %v1353 = vsel %vm223, %v1346, %v1350
    %v1354 = vsel %vm223, %v1348, %v1352
    %v1355 = vsel %vm223, %v1342, %v1346
    %v1356 = vsel %vm223, %v1344, %v1348
    %v1357 = vsel %vm223, %v1338, %v1342
    %v1358 = vsel %vm223, %v1340, %v1344
    %v1359 = vsel %vm223, %v1350, %v1338
    %v1360 = vsel %vm223, %v1352, %v1340
    %v1361 = vmul.f32 %v1359, %v86
    %v1362 = vmul.f32 %v1357, %v90
    %v1363 = vmul.f32 %v1355, %v94
    %v1364 = vmul.f32 %v1353, %v98
    %v1365 = vmul.f32 %v1360, %v86
    %v1366 = vmul.f32 %v1358, %v90
    %v1367 = vmul.f32 %v1356, %v94
    %v1368 = vmul.f32 %v1354, %v98
    %1369 = vrot.lane.b32.xlu0 %v1327, 16
    %v1370 = vpop.permute.xlu0 %1369
    %1371 = vrot.lane.b32.xlu0 %v1331, 16
    %v1372 = vpop.permute.xlu0 %1371
    %1373 = vrot.lane.b32.xlu0 %v1328, 16
    %v1374 = vpop.permute.xlu0 %1373
    %1375 = vrot.lane.b32.xlu0 %v1332, 16
    %v1376 = vpop.permute.xlu0 %1375
    %1377 = vrot.lane.b32.xlu0 %v1329, 16
    %v1378 = vpop.permute.xlu0 %1377
    %1379 = vrot.lane.b32.xlu0 %v1333, 16
    %v1380 = vpop.permute.xlu0 %1379
    %1381 = vrot.lane.b32.xlu0 %v1330, 16
    %v1382 = vpop.permute.xlu0 %1381
    %1383 = vrot.lane.b32.xlu0 %v1334, 16
    %v1384 = vpop.permute.xlu0 %1383
    %v1385 = vsel %vm240, %v1378, %v1382
    %v1386 = vsel %vm240, %v1380, %v1384
    %v1387 = vsel %vm240, %v1374, %v1378
    %v1388 = vsel %vm240, %v1376, %v1380
    %v1389 = vsel %vm240, %v1370, %v1374
    %v1390 = vsel %vm240, %v1372, %v1376
    %v1391 = vsel %vm240, %v1382, %v1370
    %v1392 = vsel %vm240, %v1384, %v1372
    %v1393 = vmul.f32 %v1391, %v102
    %v1394 = vmul.f32 %v1389, %v106
    %v1395 = vmul.f32 %v1387, %v110
    %v1396 = vmul.f32 %v1385, %v114
    %v1397 = vmul.f32 %v1392, %v102
    %v1398 = vmul.f32 %v1390, %v106
    %v1399 = vmul.f32 %v1388, %v110
    %v1400 = vmul.f32 %v1386, %v114
    %1401 = vrot.lane.b32.xlu0 %v1327, 15
    %v1402 = vpop.permute.xlu0 %1401
    %1403 = vrot.lane.b32.xlu0 %v1331, 15
    %v1404 = vpop.permute.xlu0 %1403
    %1405 = vrot.lane.b32.xlu0 %v1328, 15
    %v1406 = vpop.permute.xlu0 %1405
    %1407 = vrot.lane.b32.xlu0 %v1332, 15
    %v1408 = vpop.permute.xlu0 %1407
    %1409 = vrot.lane.b32.xlu0 %v1329, 15
    %v1410 = vpop.permute.xlu0 %1409
    %1411 = vrot.lane.b32.xlu0 %v1333, 15
    %v1412 = vpop.permute.xlu0 %1411
    %1413 = vrot.lane.b32.xlu0 %v1330, 15
    %v1414 = vpop.permute.xlu0 %1413
    %1415 = vrot.lane.b32.xlu0 %v1334, 15
    %v1416 = vpop.permute.xlu0 %1415
    %v1417 = vsel %vm257, %v1410, %v1414
    %v1418 = vsel %vm257, %v1412, %v1416
    %v1419 = vsel %vm257, %v1406, %v1410
    %v1420 = vsel %vm257, %v1408, %v1412
    %v1421 = vsel %vm257, %v1402, %v1406
    %v1422 = vsel %vm257, %v1404, %v1408
    %v1423 = vsel %vm257, %v1414, %v1402
    %v1424 = vsel %vm257, %v1416, %v1404
    %v1425 = vmul.f32 %v1423, %v118
    %v1426 = vmul.f32 %v1421, %v122
    %v1427 = vmul.f32 %v1419, %v126
    %v1428 = vmul.f32 %v1417, %v130
    %v1429 = vmul.f32 %v1424, %v118
    %v1430 = vmul.f32 %v1422, %v122
    %v1431 = vmul.f32 %v1420, %v126
    %v1432 = vmul.f32 %v1418, %v130
    %1433 = vrot.lane.b32.xlu0 %v1327, 1
    %v1434 = vpop.permute.xlu0 %1433
    %1435 = vrot.lane.b32.xlu0 %v1331, 1
    %v1436 = vpop.permute.xlu0 %1435
    %1437 = vrot.lane.b32.xlu0 %v1328, 1
    %v1438 = vpop.permute.xlu0 %1437
    %1439 = vrot.lane.b32.xlu0 %v1332, 1
    %v1440 = vpop.permute.xlu0 %1439
    %1441 = vrot.lane.b32.xlu0 %v1329, 1
    %v1442 = vpop.permute.xlu0 %1441
    %1443 = vrot.lane.b32.xlu0 %v1333, 1
    %v1444 = vpop.permute.xlu0 %1443
    %1445 = vrot.lane.b32.xlu0 %v1330, 1
    %v1446 = vpop.permute.xlu0 %1445
    %1447 = vrot.lane.b32.xlu0 %v1334, 1
    %v1448 = vpop.permute.xlu0 %1447
    %v1449 = vsel %vm274, %v1442, %v1446
    %v1450 = vsel %vm274, %v1444, %v1448
    %v1451 = vsel %vm274, %v1438, %v1442
    %v1452 = vsel %vm274, %v1440, %v1444
    %v1453 = vsel %vm274, %v1434, %v1438
    %v1454 = vsel %vm274, %v1436, %v1440
    %v1455 = vsel %vm274, %v1446, %v1434
    %v1456 = vsel %vm274, %v1448, %v1436
    %v1457 = vmul.f32 %v1455, %v134
    %v1458 = vmul.f32 %v1453, %v138
    %v1459 = vmul.f32 %v1451, %v142
    %v1460 = vmul.f32 %v1449, %v146
    %v1461 = vmul.f32 %v1456, %v134
    %v1462 = vmul.f32 %v1454, %v138
    %v1463 = vmul.f32 %v1452, %v142
    %v1464 = vmul.f32 %v1450, %v146
    %1465 = vrot.lane.b32.xlu0 %v1327, 127
    %v1466 = vpop.permute.xlu0 %1465
    %1467 = vrot.lane.b32.xlu0 %v1331, 127
    %v1468 = vpop.permute.xlu0 %1467
    %1469 = vrot.lane.b32.xlu0 %v1328, 127
    %v1470 = vpop.permute.xlu0 %1469
    %1471 = vrot.lane.b32.xlu0 %v1332, 127
    %v1472 = vpop.permute.xlu0 %1471
    %1473 = vrot.lane.b32.xlu0 %v1329, 127
    %v1474 = vpop.permute.xlu0 %1473
    %1475 = vrot.lane.b32.xlu0 %v1333, 127
    %v1476 = vpop.permute.xlu0 %1475
    %1477 = vrot.lane.b32.xlu0 %v1330, 127
    %v1478 = vpop.permute.xlu0 %1477
    %1479 = vrot.lane.b32.xlu0 %v1334, 127
    %v1480 = vpop.permute.xlu0 %1479
    %v1481 = vsel %vm291, %v1474, %v1478
    %v1482 = vsel %vm291, %v1476, %v1480
    %v1483 = vsel %vm291, %v1470, %v1474
    %v1484 = vsel %vm291, %v1472, %v1476
    %v1485 = vsel %vm291, %v1466, %v1470
    %v1486 = vsel %vm291, %v1468, %v1472
    %v1487 = vsel %vm291, %v1478, %v1466
    %v1488 = vsel %vm291, %v1480, %v1468
    %v1489 = vmul.f32 %v1485, %v150
    %v1490 = vmul.f32 %v1483, %v154
    %v1491 = vmul.f32 %v1481, %v158
    %v1492 = vmul.f32 %v1487, %v162
    %v1493 = vmul.f32 %v1486, %v150
    %v1494 = vmul.f32 %v1484, %v154
    %v1495 = vmul.f32 %v1482, %v158
    %v1496 = vmul.f32 %v1488, %v162
    %1497 = vrot.lane.b32.xlu0 %v1327, 113
    %v1498 = vpop.permute.xlu0 %1497
    %1499 = vrot.lane.b32.xlu0 %v1331, 113
    %v1500 = vpop.permute.xlu0 %1499
    %1501 = vrot.lane.b32.xlu0 %v1328, 113
    %v1502 = vpop.permute.xlu0 %1501
    %1503 = vrot.lane.b32.xlu0 %v1332, 113
    %v1504 = vpop.permute.xlu0 %1503
    %1505 = vrot.lane.b32.xlu0 %v1329, 113
    %v1506 = vpop.permute.xlu0 %1505
    %1507 = vrot.lane.b32.xlu0 %v1333, 113
    %v1508 = vpop.permute.xlu0 %1507
    %1509 = vrot.lane.b32.xlu0 %v1330, 113
    %v1510 = vpop.permute.xlu0 %1509
    %1511 = vrot.lane.b32.xlu0 %v1334, 113
    %v1512 = vpop.permute.xlu0 %1511
    %v1513 = vsel %vm308, %v1506, %v1510
    %v1514 = vsel %vm308, %v1508, %v1512
    %v1515 = vsel %vm308, %v1502, %v1506
    %v1516 = vsel %vm308, %v1504, %v1508
    %v1517 = vsel %vm308, %v1498, %v1502
    %v1518 = vsel %vm308, %v1500, %v1504
    %v1519 = vsel %vm308, %v1510, %v1498
    %v1520 = vsel %vm308, %v1512, %v1500
    %v1521 = vmul.f32 %v1517, %v166
    %v1522 = vmul.f32 %v1515, %v170
    %v1523 = vmul.f32 %v1513, %v174
    %v1524 = vmul.f32 %v1519, %v178
    %v1525 = vmul.f32 %v1518, %v166
    %v1526 = vmul.f32 %v1516, %v170
    %v1527 = vmul.f32 %v1514, %v174
    %v1528 = vmul.f32 %v1520, %v178
    %1529 = vrot.lane.b32.xlu0 %v1327, 112
    %v1530 = vpop.permute.xlu0 %1529
    %1531 = vrot.lane.b32.xlu0 %v1331, 112
    %v1532 = vpop.permute.xlu0 %1531
    %1533 = vrot.lane.b32.xlu0 %v1328, 112
    %v1534 = vpop.permute.xlu0 %1533
    %1535 = vrot.lane.b32.xlu0 %v1332, 112
    %v1536 = vpop.permute.xlu0 %1535
    %1537 = vrot.lane.b32.xlu0 %v1329, 112
    %v1538 = vpop.permute.xlu0 %1537
    %1539 = vrot.lane.b32.xlu0 %v1333, 112
    %v1540 = vpop.permute.xlu0 %1539
    %1541 = vrot.lane.b32.xlu0 %v1330, 112
    %v1542 = vpop.permute.xlu0 %1541
    %1543 = vrot.lane.b32.xlu0 %v1334, 112
    %v1544 = vpop.permute.xlu0 %1543
    %v1545 = vsel %vm325, %v1538, %v1542
    %v1546 = vsel %vm325, %v1540, %v1544
    %v1547 = vsel %vm325, %v1534, %v1538
    %v1548 = vsel %vm325, %v1536, %v1540
    %v1549 = vsel %vm325, %v1530, %v1534
    %v1550 = vsel %vm325, %v1532, %v1536
    %v1551 = vsel %vm325, %v1542, %v1530
    %v1552 = vsel %vm325, %v1544, %v1532
    %v1553 = vmul.f32 %v1549, %v182
    %v1554 = vmul.f32 %v1547, %v186
    %v1555 = vmul.f32 %v1545, %v190
    %v1556 = vmul.f32 %v1551, %v194
    %v1557 = vmul.f32 %v1550, %v182
    %v1558 = vmul.f32 %v1548, %v186
    %v1559 = vmul.f32 %v1546, %v190
    %v1560 = vmul.f32 %v1552, %v194
    %1561 = vrot.lane.b32.xlu0 %v1327, 111
    %v1562 = vpop.permute.xlu0 %1561
    %1563 = vrot.lane.b32.xlu0 %v1331, 111
    %v1564 = vpop.permute.xlu0 %1563
    %1565 = vrot.lane.b32.xlu0 %v1328, 111
    %v1566 = vpop.permute.xlu0 %1565
    %1567 = vrot.lane.b32.xlu0 %v1332, 111
    %v1568 = vpop.permute.xlu0 %1567
    %1569 = vrot.lane.b32.xlu0 %v1329, 111
    %v1570 = vpop.permute.xlu0 %1569
    %1571 = vrot.lane.b32.xlu0 %v1333, 111
    %v1572 = vpop.permute.xlu0 %1571
    %1573 = vrot.lane.b32.xlu0 %v1330, 111
    %v1574 = vpop.permute.xlu0 %1573
    %1575 = vrot.lane.b32.xlu0 %v1334, 111
    %v1576 = vpop.permute.xlu0 %1575
    %v1577 = vsel %vm342, %v1570, %v1574
    %v1578 = vsel %vm342, %v1572, %v1576
    %v1579 = vsel %vm342, %v1566, %v1570
    %v1580 = vsel %vm342, %v1568, %v1572
    %v1581 = vsel %vm342, %v1562, %v1566
    %v1582 = vsel %vm342, %v1564, %v1568
    %v1583 = vsel %vm342, %v1574, %v1562
    %v1584 = vsel %vm342, %v1576, %v1564
    %v1585 = vmul.f32 %v1581, %v198
    %v1586 = vmul.f32 %v1579, %v202
    %v1587 = vmul.f32 %v1577, %v206
    %v1588 = vmul.f32 %v1583, %v210
    %v1589 = vmul.f32 %v1582, %v198
    %v1590 = vmul.f32 %v1580, %v202
    %v1591 = vmul.f32 %v1578, %v206
    %v1592 = vmul.f32 %v1584, %v210
    %1593 = vset.pattern.permute.xlu0 6
    %1594 = vperm.xlu0 %1593, %v77
    %v1595 = vpop.permute.xlu0 %1594
    %v1598 = vsel %vm982, %v1336, 0
    %1600 = vmatprep.subr.mxu0 %v1558
    %1601 = vmatpush1.msra.mxu0 %v1557
    %1602 = vmatprep.subr.mxu0 %v1554
    %1603 = vmatpush1.msra.mxu0 %v1553
    %1604 = vmatprep.subr.mxu0 %v1526
    %1605 = vmatpush1.msra.mxu0 %v1525
    %1606 = vmatprep.subr.mxu0 %v1522
    %1607 = vmatpush1.msra.mxu0 %v1521
    %1608 = vmatprep.subr.mxu0 %v1494
    %1609 = vmatpush1.msra.mxu0 %v1493
    %1610 = vmatprep.subr.mxu0 %v1490
    %1611 = vmatpush1.msra.mxu0 %v1489
    %1612 = vmatprep.subr.mxu0 %v1332
    %1613 = vmatpush1.msra.mxu0 %v1331
    %1614 = vmatprep.subr.mxu0 %v1328
    %1615 = vmatpush1.msra.mxu0 %v1327
    %1616 = vmatprep.subr.mxu0 %v1462
    %1617 = vmatpush1.msra.mxu0 %v1461
    %1618 = vmatprep.subr.mxu0 %v1458
    %1619 = vmatpush1.msra.mxu0 %v1457
    %1620 = vmatprep.subr.mxu0 %v1430
    %1621 = vmatpush1.msra.mxu0 %v1429
    %1622 = vmatprep.subr.mxu0 %v1426
    %1623 = vmatpush1.msra.mxu0 %v1425
    %1624 = vmatprep.subr.mxu0 %v1398
    %1625 = vmatpush1.msra.mxu0 %v1397
    %1626 = vmatprep.subr.mxu0 %v1394
    %1627 = vmatpush1.msra.mxu0 %v1393
    %1628 = vmatprep.subr.mxu0 %v1366
    %1629 = vmatpush1.msra.mxu0 %v1365
    %1630 = vmatprep.subr.mxu0 %v1362
    %1631 = vmatpush1.msra.mxu0 %v1361
    %1632 = vmatprep.subr.mxu0 0.0
    %1633 = vmatpush2.msra.mxu0 0.0
    %1634 = vmatprep.subr.mxu0 0.0
    %1635 = vmatpush2.msra.mxu0 0.0
    %1636 = vmatprep.subr.mxu0 0.0
    %1637 = vmatpush2.msra.mxu0 0.0
    %1638 = vmatprep.subr.mxu0 0.0
    %1639 = vmatpush2.msra.mxu0 0.0
    %1640 = vmatprep.subr.mxu0 0.0
    %1641 = vmatpush2.msra.mxu0 0.0
    %1642 = vmatprep.subr.mxu0 0.0
    %1643 = vmatpush2.msra.mxu0 0.0
    %1644 = vmatprep.subr.mxu0 0.0
    %1645 = vmatpush2.msra.mxu0 0.0
    %1646 = vmatprep.subr.mxu0 0.0
    %1647 = vmatpush2.msra.mxu0 0.0
    %1648 = vmatprep.subr.mxu0 0.0
    %1649 = vmatpush2.msra.mxu0 0.0
    %1650 = vmatprep.subr.mxu0 0.0
    %1651 = vmatpush2.msra.mxu0 0.0
    %1652 = vmatprep.subr.mxu0 0.0
    %1653 = vmatpush2.msra.mxu0 0.0
    %1654 = vmatprep.subr.mxu0 0.0
    %1655 = vmatpush2.msra.mxu0 0.0
    %1656 = vmatprep.subr.mxu0 0.0
    %1657 = vmatpush2.msra.mxu0 0.0
    %1658 = vmatprep.subr.mxu0 0.0
    %1659 = vmatpush2.msra.mxu0 0.0
    %1660 = vmatprep.subr.mxu0 %v1590
    %1661 = vmatpush2.msra.mxu0 %v1589
    %1662 = vmatprep.subr.mxu0 %v1586
    %1663 = vmatpush2.msra.mxu0 %v1585
    %1664 = vmatprep.mubr.f32.mxu0 %v1598
    %1665 = vmatmul.mubr.f32.gmra.mxu0 %v1335
    %v1666 = vpop.f32.mrf.mxu0
    %v1667 = vadd.f32 %v1595, %v1666
    %v1668 = vpop.f32.mrf.mxu0
    %v1669 = vadd.f32 %v1595, %v1668
    %1670 = vdwg.mxu0
    %1671 = vmatprep.subr.mxu0 %v1560
    %1672 = vmatpush1.msra.mxu0 %v1559
    %1673 = vmatprep.subr.mxu0 %v1556
    %1674 = vmatpush1.msra.mxu0 %v1555
    %1675 = vmatprep.subr.mxu0 %v1528
    %1676 = vmatpush1.msra.mxu0 %v1527
    %1677 = vmatprep.subr.mxu0 %v1524
    %1678 = vmatpush1.msra.mxu0 %v1523
    %1679 = vmatprep.subr.mxu0 %v1496
    %1680 = vmatpush1.msra.mxu0 %v1495
    %1681 = vmatprep.subr.mxu0 %v1492
    %1682 = vmatpush1.msra.mxu0 %v1491
    %1683 = vmatprep.subr.mxu0 %v1334
    %1684 = vmatpush1.msra.mxu0 %v1333
    %1685 = vmatprep.subr.mxu0 %v1330
    %1686 = vmatpush1.msra.mxu0 %v1329
    %1687 = vmatprep.subr.mxu0 %v1464
    %1688 = vmatpush1.msra.mxu0 %v1463
    %1689 = vmatprep.subr.mxu0 %v1460
    %1690 = vmatpush1.msra.mxu0 %v1459
    %1691 = vmatprep.subr.mxu0 %v1432
    %1692 = vmatpush1.msra.mxu0 %v1431
    %1693 = vmatprep.subr.mxu0 %v1428
    %1694 = vmatpush1.msra.mxu0 %v1427
    %1695 = vmatprep.subr.mxu0 %v1400
    %1696 = vmatpush1.msra.mxu0 %v1399
    %1697 = vmatprep.subr.mxu0 %v1396
    %1698 = vmatpush1.msra.mxu0 %v1395
    %1699 = vmatprep.subr.mxu0 %v1368
    %1700 = vmatpush1.msra.mxu0 %v1367
    %1701 = vmatprep.subr.mxu0 %v1364
    %1702 = vmatpush1.msra.mxu0 %v1363
    %1703 = vmatprep.subr.mxu0 0.0
    %1704 = vmatpush2.msra.mxu0 0.0
    %1705 = vmatprep.subr.mxu0 0.0
    %1706 = vmatpush2.msra.mxu0 0.0
    %1707 = vmatprep.subr.mxu0 0.0
    %1708 = vmatpush2.msra.mxu0 0.0
    %1709 = vmatprep.subr.mxu0 0.0
    %1710 = vmatpush2.msra.mxu0 0.0
    %1711 = vmatprep.subr.mxu0 0.0
    %1712 = vmatpush2.msra.mxu0 0.0
    %1713 = vmatprep.subr.mxu0 0.0
    %1714 = vmatpush2.msra.mxu0 0.0
    %1715 = vmatprep.subr.mxu0 0.0
    %1716 = vmatpush2.msra.mxu0 0.0
    %1717 = vmatprep.subr.mxu0 0.0
    %1718 = vmatpush2.msra.mxu0 0.0
    %1719 = vmatprep.subr.mxu0 0.0
    %1720 = vmatpush2.msra.mxu0 0.0
    %1721 = vmatprep.subr.mxu0 0.0
    %1722 = vmatpush2.msra.mxu0 0.0
    %1723 = vmatprep.subr.mxu0 0.0
    %1724 = vmatpush2.msra.mxu0 0.0
    %1725 = vmatprep.subr.mxu0 0.0
    %1726 = vmatpush2.msra.mxu0 0.0
    %1727 = vmatprep.subr.mxu0 0.0
    %1728 = vmatpush2.msra.mxu0 0.0
    %1729 = vmatprep.subr.mxu0 0.0
    %1730 = vmatpush2.msra.mxu0 0.0
    %1731 = vmatprep.subr.mxu0 %v1592
    %1732 = vmatpush2.msra.mxu0 %v1591
    %1733 = vmatprep.subr.mxu0 %v1588
    %1734 = vmatpush2.msra.mxu0 %v1587
    %1735 = vmatprep.mubr.f32.mxu0 %v1598
    %1736 = vmatmul.mubr.f32.gmra.mxu0 %v1335
    %v1737 = vpop.f32.mrf.mxu0
    %v1738 = vadd.f32 %v1595, %v1737
    %v1739 = vpop.f32.mrf.mxu0
    %v1740 = vadd.f32 %v1595, %v1739
    %1741 = vdwg.mxu0
    %1742 = vst [vmem:[#allocation10] sm:$0xff] %v1667
    %1743 = vst [vmem:[#allocation10 + $0x8] sm:$0xff] %v1669
    %1744 = vst [vmem:[#allocation10 + $0x10] sm:$0xff] %v1738
    %1745 = vst [vmem:[#allocation10 + $0x18] sm:$0xff] %v1740
    // Predicated region
    $region42: #{tpu_custom_call.1} parent=1 // pred_check
      _
    $region43: #{tpu_custom_call.1} parent=1 // pred_check_branch
      %1747 = sbr.rel (0) target = $region45
    $region44: #{tpu_custom_call.1} parent=1 // pred_region
      %s1749 = ssub.s32 512, 512
      %1750 = vsyncadd [#allocation4], %s1749
      %s1752 = sshll.u32 [#allocation10], 4
      %s1753 = int_to_ptr.vmem [resolvable:$true] %s1752
      %1755 = dma.vmem_to_hbm [thread:$0]  %s1753, 512, %s6, [#allocation4]
    $region45: #{tpu_custom_call.1} parent=1 // pred_fallthru
      _
    // Predicated region
    $region46: #{tpu_custom_call.1} parent=1 // pred_check
      _
    $region47: #{tpu_custom_call.1} parent=1 // pred_check_branch
      %1757 = sbr.rel (0) target = $region49
    $region48: #{tpu_custom_call.1} parent=1 // pred_region
      %1758 = dma.done [#allocation4], 512
    $region49: #{tpu_custom_call.1} parent=1 // pred_fallthru
      _
    %1759 = vsyncpa [#allocation3], 1
    %1760 = vsyncpa [#allocation6], 1
    %1761 = vsyncpa [#allocation9], 1
    %1762 = vsyncpa [#allocation4], 1

</llo_original>
